<compile_context>
chip_gen: v5e
topology: v5e:2x2
jax: 0.10.0
libtpu: 0.0.40
codegen_flags: <defaults>
</compile_context>

<pallas_src>
import jax
import jax.numpy as jnp
from jax import lax
from jax.experimental import pallas as pl
from jax.experimental.pallas import tpu as pltpu


def _round_up(x, m):
    return (x + m - 1) // m * m


# ---------------------------------------------------------------------------
# Fused multi-layer LSTM recurrence
#   grid = (batch_splits [parallel], time_chunks [arbitrary])
#   h/c state + inter-layer sequence live in VMEM scratch across time chunks.
# ---------------------------------------------------------------------------
def _make_encoder_lstm_kernel(num_layer, time_chunk, batch_tile, hidden,
                              emb_dim, seq_len, mask_tail):
    H = hidden
    G = 4 * H
    L = num_layer
    n_in = 1 + 3 * L

    def kernel(*refs):
        x_ref = refs[0]                         # (Tt, Bt, E)  bf16 embeddings
        wih_refs = refs[1:1 + L]                # (E_in, 4H)   bf16, resident
        whh_refs = refs[1 + L:1 + 2 * L]        # (H, 4H)      bf16, resident
        b_refs = refs[1 + 2 * L:1 + 3 * L]      # (1, 4H)      f32,  resident
        h_out_ref = refs[n_in]                  # (L, Bt, H)   f32
        c_out_ref = refs[n_in + 1]              # (L, Bt, H)   f32
        scratch = refs[n_in + 2:]
        h_sc, c_sc, gx_sc = scratch[0], scratch[1], scratch[2]
        seq_sc = scratch[3] if L > 1 else None

        chunk = pl.program_id(1)

        @pl.when(chunk == 0)
        def _():
            h_sc[...] = jnp.zeros_like(h_sc)
            c_sc[...] = jnp.zeros_like(c_sc)

        def lstm_cell(gates, c_prev):
            # PyTorch gate order [i, f, g, o]; sigmoid/tanh run on the EUP.
            i_g = jax.nn.sigmoid(gates[:, 0 * H:1 * H])
            f_g = jax.nn.sigmoid(gates[:, 1 * H:2 * H])
            g_g = jnp.tanh(gates[:, 2 * H:3 * H])
            o_g = jax.nn.sigmoid(gates[:, 3 * H:4 * H])
            c_new = f_g * c_prev + i_g * g_g
            h_new = o_g * jnp.tanh(c_new)
            return h_new, c_new

        for layer in range(L):
            # Chunk-level hoist of this layer's input projection:
            # one (Tt*Bt, E_in) @ (E_in, 4H) bf16 MXU matmul per chunk.
            if layer == 0:
                x_chunk = x_ref[...].reshape(time_chunk * batch_tile, emb_dim)
            else:
                x_chunk = seq_sc[...].reshape(time_chunk * batch_tile, H)
            gx = (jnp.dot(x_chunk, wih_refs[layer][...],
                          preferred_element_type=jnp.float32)
                  + b_refs[layer][...])
            gx_sc[...] = gx.reshape(time_chunk, batch_tile, G)

            w_hh = whh_refs[layer][...]                     # bf16 (H, 4H)
            write_seq = layer < L - 1                       # static

            def step(t, carry, w_hh=w_hh, write_seq=write_seq):
                h, c = carry                                # f32 (Bt, H)
                gates = gx_sc[t] + jnp.dot(
                    h.astype(jnp.bfloat16), w_hh,
                    preferred_element_type=jnp.float32)
                h_new, c_new = lstm_cell(gates, c)
                if mask_tail:
                    # Padded time steps (t_global >= T) must not touch state.
                    valid = (chunk * time_chunk + t) < seq_len
                    h_new = jnp.where(valid, h_new, h)
                    c_new = jnp.where(valid, c_new, c)
                if write_seq:
                    seq_sc[t] = h_new.astype(jnp.bfloat16)  # feeds next layer
                return (h_new, c_new)

            h_f, c_f = lax.fori_loop(
                0, time_chunk, step, (h_sc[layer], c_sc[layer]),
                unroll=min(4, time_chunk))
            h_sc[layer] = h_f
            c_sc[layer] = c_f

        # Written every chunk (resident output blocks); the value after the
        # last chunk of this batch split is the LSTM's (h_n, c_n).
        h_out_ref[...] = h_sc[...]
        c_out_ref[...] = c_sc[...]

    return kernel


def lstm_encoder_pallas(embed, w_ih_t, w_hh_t, bias, *, time_chunk=32):
    """embed: (T, B, E) f32/bf16.  Returns (h_n, c_n), each (num_layer, B, H)."""
    T, B, E = embed.shape
    L = len(w_hh_t)
    H = w_hh_t[0].shape[0]
    G = 4 * H

    # Batch padding: sublane multiple of 8; 2-way batch split (v7x megacore)
    # whenever at least 8 rows per split are available.
    B_pad = _round_up(B, 8)
    n_splits = 2 if B_pad >= 16 else 1
    if n_splits == 2:
        B_pad = _round_up(B_pad, 16)
    Bt = B_pad // n_splits

    # Time chunking: pad T up to a multiple of the chunk and mask the tail.
    Tt = min(time_chunk, T)
    T_pad = _round_up(T, Tt)
    n_chunks = T_pad // Tt
    mask_tail = (T_pad != T)

    x = embed.astype(jnp.bfloat16)
    if T_pad != T or B_pad != B:
        x = jnp.pad(x, ((0, T_pad - T), (0, B_pad - B), (0, 0)))

    const = pl.Buffered(1)   # constant-index blocks: single VMEM buffer
    in_specs = (
        [pl.BlockSpec((Tt, Bt, E), lambda s, c: (c, s, 0))]              # x
        + [pl.BlockSpec(w.shape, lambda s, c: (0, 0), pipeline_mode=const)
           for w in w_ih_t]                                              # W_ih
        + [pl.BlockSpec(w.shape, lambda s, c: (0, 0), pipeline_mode=const)
           for w in w_hh_t]                                              # W_hh
        + [pl.BlockSpec(b.shape, lambda s, c: (0, 0), pipeline_mode=const)
           for b in bias]                                                # bias
    )

    scratch_shapes = [
        pltpu.VMEM((L, Bt, H), jnp.float32),        # h states
        pltpu.VMEM((L, Bt, H), jnp.float32),        # c states
        pltpu.VMEM((Tt, Bt, G), jnp.float32),       # per-layer gate pre-acts
    ]
    if L > 1:
        scratch_shapes.append(pltpu.VMEM((Tt, Bt, H), jnp.bfloat16))  # seq

    # Explicit VMEM budget (floor 32 MiB, cap 64 MiB so it is valid on v7x).
    bytes_stream = 2 * Tt * Bt * E * 2                       # dbl-buf bf16 x
    bytes_w = (sum(int(w.size) * 2 for w in list(w_ih_t) + list(w_hh_t))
               + sum(int(b.size) * 4 for b in bias))          # Buffered(1)
    bytes_scratch = (2 * L * Bt * H * 4 + Tt * Bt * G * 4
                     + (Tt * Bt * H * 2 if L > 1 else 0))
    bytes_out = 2 * 2 * L * Bt * H * 4                        # dbl-buf outputs
    need = bytes_stream + bytes_w + bytes_scratch + bytes_out
    vmem_limit = int(min(max(2 * need + (8 << 20), 32 << 20), 64 << 20))

    kernel = _make_encoder_lstm_kernel(L, Tt, Bt, H, E, T, mask_tail)
    h_n, c_n = pl.pallas_call(
        kernel,
        out_shape=(
            jax.ShapeDtypeStruct((L, B_pad, H), jnp.float32),
            jax.ShapeDtypeStruct((L, B_pad, H), jnp.float32),
        ),
        grid_spec=pltpu.PrefetchScalarGridSpec(
            num_scalar_prefetch=0,
            grid=(n_splits, n_chunks),
            in_specs=in_specs,
            out_specs=[
                pl.BlockSpec((L, Bt, H), lambda s, c: (0, s, 0)),
                pl.BlockSpec((L, Bt, H), lambda s, c: (0, s, 0)),
            ],
            scratch_shapes=scratch_shapes,
        ),
        compiler_params=pltpu.CompilerParams(
            dimension_semantics=("parallel", "arbitrary"),
            vmem_limit_bytes=vmem_limit),
    )(x, *w_ih_t, *w_hh_t, *bias)
    return h_n[:, :B, :], c_n[:, :B, :]


class EncoderPallas:
    """JAX/Pallas port of the PyTorch Encoder module (eval-mode dropout)."""

    def __init__(self, input_size, embedding_size, hidden_size, num_layer, p, key):
        self.hidden_size = hidden_size
        self.num_layer = num_layer
        self.p = p  # dropout prob (identity in this inference implementation)

        keys = jax.random.split(key, 1 + 4 * num_layer)
        # nn.Embedding default init ~ N(0, 1)
        self.embedding = jax.random.normal(
            keys[0], (input_size, embedding_size), dtype=jnp.float32)

        k = 1.0 / jnp.sqrt(hidden_size)
        self.w_ih_t, self.w_hh_t, self.bias = [], [], []
        for layer in range(num_layer):
            e_in = embedding_size if layer == 0 else hidden_size
            k0, k1, k2, k3 = keys[1 + 4 * layer: 1 + 4 * (layer + 1)]
            w_ih = jax.random.uniform(k0, (4 * hidden_size, e_in),
                                      minval=-k, maxval=k, dtype=jnp.float32)
            w_hh = jax.random.uniform(k1, (4 * hidden_size, hidden_size),
                                      minval=-k, maxval=k, dtype=jnp.float32)
            b_ih = jax.random.uniform(k2, (4 * hidden_size,),
                                      minval=-k, maxval=k, dtype=jnp.float32)
            b_hh = jax.random.uniform(k3, (4 * hidden_size,),
                                      minval=-k, maxval=k, dtype=jnp.float32)
            # Pre-transpose ONCE, store bf16 (MXU-native); bias stays f32.
            self.w_ih_t.append(w_ih.T.astype(jnp.bfloat16))   # (E_in, 4H)
            self.w_hh_t.append(w_hh.T.astype(jnp.bfloat16))   # (H, 4H)
            self.bias.append((b_ih + b_hh).reshape(1, 4 * hidden_size))

    def __call__(self, x, *, time_chunk=32):
        # x: (T, B) int32 token ids
        embed = jnp.take(self.embedding, x, axis=0)            # (T, B, E)
        # dropout: identity (eval mode)
        return lstm_encoder_pallas(embed, self.w_ih_t, self.w_hh_t, self.bias,
                                   time_chunk=time_chunk)


def _reference_lstm(embed, w_ih_t_bf16, w_hh_t_bf16, biases, num_layer, H):
    """Pure-JAX reference mirroring the kernel's bf16 casts (f32 math)."""
    T, B, _ = embed.shape
    seq = embed.astype(jnp.bfloat16).astype(jnp.float32)
    hs, cs = [], []
    for layer in range(num_layer):
        w_ih = w_ih_t_bf16[layer].astype(jnp.float32)
        w_hh = w_hh_t_bf16[layer].astype(jnp.float32)
        b = biases[layer]
        h = jnp.zeros((B, H), jnp.float32)
        c = jnp.zeros((B, H), jnp.float32)
        outs = []
        for t in range(T):
            h_in = h.astype(jnp.bfloat16).astype(jnp.float32)
            gates = seq[t] @ w_ih + h_in @ w_hh + b
            i = jax.nn.sigmoid(gates[:, 0:H])
            f = jax.nn.sigmoid(gates[:, H:2 * H])
            g = jnp.tanh(gates[:, 2 * H:3 * H])
            o = jax.nn.sigmoid(gates[:, 3 * H:4 * H])
            c = f * c + i * g
            h = o * jnp.tanh(c)
            # inter-layer sequence is stored in bf16 by the kernel
            outs.append(h.astype(jnp.bfloat16).astype(jnp.float32))
        seq = jnp.stack(outs, axis=0)
        hs.append(h)
        cs.append(c)
    return jnp.stack(hs, 0), jnp.stack(cs, 0)


if __name__ == "__main__":
    import numpy as np

    # Small, module-consistent shapes.
    input_size = 50       # vocab
    embedding_size = 16
    hidden_size = 32
    num_layer = 2
    p = 0.0
    T, B = 9, 16          # T=9 with chunk=4 exercises tail masking;
                          # B=16 exercises the 2-way batch-split parallel axis

    key = jax.random.PRNGKey(0)
    pkey, xkey = jax.random.split(key)

    enc = EncoderPallas(input_size, embedding_size, hidden_size, num_layer, p, pkey)
    x = jax.random.randint(xkey, (T, B), 0, input_size, dtype=jnp.int32)

    # time_chunk=4 -> 3 chunks (last partially masked), grid = (2, 3).
    hidden, cell = enc(x, time_chunk=4)
    hidden = jax.block_until_ready(hidden)
    cell = jax.block_until_ready(cell)

    assert hidden.shape == (num_layer, B, hidden_size)
    assert cell.shape == (num_layer, B, hidden_size)

    # Cross-check against a pure-JAX reference of the same (bf16-weight) math.
    embed = jnp.take(enc.embedding, x, axis=0)
    h_ref, c_ref = _reference_lstm(embed, enc.w_ih_t, enc.w_hh_t, enc.bias,
                                   num_layer, hidden_size)
    np.testing.assert_allclose(np.asarray(hidden), np.asarray(h_ref),
                               rtol=2e-2, atol=2e-2)
    np.testing.assert_allclose(np.asarray(cell), np.asarray(c_ref),
                               rtol=2e-2, atol=2e-2)

    print("KERNEL_OK")
</pallas_src>

<mosaic_0001>
module attributes {stable_mosaic.version = 11 : i64} {
  func.func @kernel(%arg0: i32, %arg1: i32, %arg2: memref<4x8x16xbf16, #tpu.memory_space<vmem>>, %arg3: memref<16x128xbf16, #tpu.memory_space<vmem>>, %arg4: memref<32x128xbf16, #tpu.memory_space<vmem>>, %arg5: memref<32x128xbf16, #tpu.memory_space<vmem>>, %arg6: memref<32x128xbf16, #tpu.memory_space<vmem>>, %arg7: memref<1x128xf32, #tpu.memory_space<vmem>>, %arg8: memref<1x128xf32, #tpu.memory_space<vmem>>, %arg9: memref<2x8x32xf32, #tpu.memory_space<vmem>>, %arg10: memref<2x8x32xf32, #tpu.memory_space<vmem>>, %arg11: memref<2x8x32xf32, #tpu.memory_space<vmem>>, %arg12: memref<2x8x32xf32, #tpu.memory_space<vmem>>, %arg13: memref<4x8x128xf32, #tpu.memory_space<vmem>>, %arg14: memref<4x8x32xbf16, #tpu.memory_space<vmem>>) attributes {dimension_semantics = [#tpu.dimension_semantics<parallel>, #tpu.dimension_semantics<arbitrary>], iteration_bounds = array<i64: 2, 3>, scalar_prefetch = 0 : i64, scratch_operands = 4 : i64, tpu.core_type = #tpu.core_type<tc>, window_params = [{transform_indices = @transform_0, window_bounds = array<i64: 4, 8, 16>}, {pipeline_mode = #tpu.pipeline_mode<synchronous>, transform_indices = @transform_1, window_bounds = array<i64: 16, 128>}, {pipeline_mode = #tpu.pipeline_mode<synchronous>, transform_indices = @transform_2, window_bounds = array<i64: 32, 128>}, {pipeline_mode = #tpu.pipeline_mode<synchronous>, transform_indices = @transform_3, window_bounds = array<i64: 32, 128>}, {pipeline_mode = #tpu.pipeline_mode<synchronous>, transform_indices = @transform_4, window_bounds = array<i64: 32, 128>}, {pipeline_mode = #tpu.pipeline_mode<synchronous>, transform_indices = @transform_5, window_bounds = array<i64: 1, 128>}, {pipeline_mode = #tpu.pipeline_mode<synchronous>, transform_indices = @transform_6, window_bounds = array<i64: 1, 128>}, {transform_indices = @transform_7, window_bounds = array<i64: 2, 8, 32>}, {transform_indices = @transform_8, window_bounds = array<i64: 2, 8, 32>}]} {
    %c0_i32 = arith.constant 0 : i32
    %0 = arith.cmpi eq, %arg1, %c0_i32 : i32
    %1 = arith.extui %0 : i1 to i32
    %c0_i32_0 = arith.constant 0 : i32
    %2 = arith.cmpi ne, %1, %c0_i32_0 : i32
    scf.if %2 {
      %cst_137 = arith.constant 0.000000e+00 : f32
      %355 = vector.broadcast %cst_137 : f32 to vector<2x8x32xf32>
      %c0_138 = arith.constant 0 : index
      %c0_139 = arith.constant 0 : index
      %c0_140 = arith.constant 0 : index
      %356 = vector.load %arg11[%c0_138, %c0_139, %c0_140] : memref<2x8x32xf32, #tpu.memory_space<vmem>>, vector<2x8x32xf32>
      tpu.vector_store %arg11[%c0_138, %c0_139, %c0_140], %355 {strides = array<i32>} : memref<2x8x32xf32, #tpu.memory_space<vmem>>, vector<2x8x32xf32>,
      %cst_141 = arith.constant 0.000000e+00 : f32
      %357 = vector.broadcast %cst_141 : f32 to vector<2x8x32xf32>
      %c0_142 = arith.constant 0 : index
      %c0_143 = arith.constant 0 : index
      %c0_144 = arith.constant 0 : index
      %358 = vector.load %arg12[%c0_142, %c0_143, %c0_144] : memref<2x8x32xf32, #tpu.memory_space<vmem>>, vector<2x8x32xf32>
      tpu.vector_store %arg12[%c0_142, %c0_143, %c0_144], %357 {strides = array<i32>} : memref<2x8x32xf32, #tpu.memory_space<vmem>>, vector<2x8x32xf32>,
    } else {
    }
    %c0 = arith.constant 0 : index
    %c0_1 = arith.constant 0 : index
    %c0_2 = arith.constant 0 : index
    %3 = vector.load %arg2[%c0, %c0_1, %c0_2] : memref<4x8x16xbf16, #tpu.memory_space<vmem>>, vector<4x8x16xbf16>
    %4 = vector.shape_cast %3 : vector<4x8x16xbf16> to vector<32x16xbf16>
    %c0_3 = arith.constant 0 : index
    %c0_4 = arith.constant 0 : index
    %5 = vector.load %arg3[%c0_3, %c0_4] : memref<16x128xbf16, #tpu.memory_space<vmem>>, vector<16x128xbf16>
    %cst = arith.constant dense<0.000000e+00> : vector<32x128xf32>
    %6 = tpu.matmul %4, %5, %cst {dimension_numbers = #tpu.dot_dimension_numbers<[1], [0], [0], [1], [0, 0, 1, 1], [], []>} : vector<32x16xbf16>, vector<16x128xbf16>, vector<32x128xf32> -> vector<32x128xf32>
    %c0_5 = arith.constant 0 : index
    %c0_6 = arith.constant 0 : index
    %7 = vector.load %arg7[%c0_5, %c0_6] : memref<1x128xf32, #tpu.memory_space<vmem>>, vector<1x128xf32>
    %8 = vector.broadcast %7 : vector<1x128xf32> to vector<32x128xf32>
    %9 = arith.addf %6, %8 : vector<32x128xf32>
    %10 = vector.shape_cast %9 : vector<32x128xf32> to vector<4x8x128xf32>
    %c0_7 = arith.constant 0 : index
    %c0_8 = arith.constant 0 : index
    %c0_9 = arith.constant 0 : index
    %11 = vector.load %arg13[%c0_7, %c0_8, %c0_9] : memref<4x8x128xf32, #tpu.memory_space<vmem>>, vector<4x8x128xf32>
    tpu.vector_store %arg13[%c0_7, %c0_8, %c0_9], %10 {strides = array<i32>} : memref<4x8x128xf32, #tpu.memory_space<vmem>>, vector<4x8x128xf32>,
    %c0_10 = arith.constant 0 : index
    %c0_11 = arith.constant 0 : index
    %12 = vector.load %arg5[%c0_10, %c0_11] : memref<32x128xbf16, #tpu.memory_space<vmem>>, vector<32x128xbf16>
    %c0_12 = arith.constant 0 : index
    %c0_13 = arith.constant 0 : index
    %c0_14 = arith.constant 0 : index
    %13 = vector.load %arg11[%c0_12, %c0_13, %c0_14] : memref<2x8x32xf32, #tpu.memory_space<vmem>>, vector<1x8x32xf32>
    %14 = vector.shape_cast %13 : vector<1x8x32xf32> to vector<8x32xf32>
    %c0_15 = arith.constant 0 : index
    %c0_16 = arith.constant 0 : index
    %c0_17 = arith.constant 0 : index
    %15 = vector.load %arg12[%c0_15, %c0_16, %c0_17] : memref<2x8x32xf32, #tpu.memory_space<vmem>>, vector<1x8x32xf32>
    %16 = vector.shape_cast %15 : vector<1x8x32xf32> to vector<8x32xf32>
    %c0_i32_18 = arith.constant 0 : i32
    %17 = arith.index_cast %c0_i32_18 : i32 to index
    %c0_19 = arith.constant 0 : index
    %c0_20 = arith.constant 0 : index
    %18 = vector.load %arg13[%17, %c0_19, %c0_20] : memref<4x8x128xf32, #tpu.memory_space<vmem>>, vector<1x8x128xf32>
    %19 = vector.shape_cast %18 : vector<1x8x128xf32> to vector<8x128xf32>
    %20 = arith.truncf %14 : vector<8x32xf32> to vector<8x32xbf16>
    %cst_21 = arith.constant dense<0.000000e+00> : vector<8x128xf32>
    %21 = tpu.matmul %20, %12, %cst_21 {dimension_numbers = #tpu.dot_dimension_numbers<[1], [0], [0], [1], [0, 0, 1, 1], [], []>} : vector<8x32xbf16>, vector<32x128xbf16>, vector<8x128xf32> -> vector<8x128xf32>
    %22 = arith.addf %19, %21 : vector<8x128xf32>
    %23 = vector.extract_strided_slice %22 {offsets = [0, 0], sizes = [8, 32], strides = [1, 1]} : vector<8x128xf32> to vector<8x32xf32>
    %24 = arith.negf %23 : vector<8x32xf32>
    %25 = math.exp %24 : vector<8x32xf32>
    %cst_22 = arith.constant 1.000000e+00 : f32
    %26 = vector.broadcast %cst_22 : f32 to vector<8x32xf32>
    %27 = arith.addf %26, %25 : vector<8x32xf32>
    %28 = arith.divf %26, %27 : vector<8x32xf32>
    %29 = vector.extract_strided_slice %22 {offsets = [0, 32], sizes = [8, 32], strides = [1, 1]} : vector<8x128xf32> to vector<8x32xf32>
    %30 = arith.negf %29 : vector<8x32xf32>
    %31 = math.exp %30 : vector<8x32xf32>
    %cst_23 = arith.constant 1.000000e+00 : f32
    %32 = vector.broadcast %cst_23 : f32 to vector<8x32xf32>
    %33 = arith.addf %32, %31 : vector<8x32xf32>
    %34 = arith.divf %32, %33 : vector<8x32xf32>
    %35 = vector.extract_strided_slice %22 {offsets = [0, 64], sizes = [8, 32], strides = [1, 1]} : vector<8x128xf32> to vector<8x32xf32>
    %36 = math.tanh %35 : vector<8x32xf32>
    %37 = vector.extract_strided_slice %22 {offsets = [0, 96], sizes = [8, 32], strides = [1, 1]} : vector<8x128xf32> to vector<8x32xf32>
    %38 = arith.negf %37 : vector<8x32xf32>
    %39 = math.exp %38 : vector<8x32xf32>
    %cst_24 = arith.constant 1.000000e+00 : f32
    %40 = vector.broadcast %cst_24 : f32 to vector<8x32xf32>
    %41 = arith.addf %40, %39 : vector<8x32xf32>
    %42 = arith.divf %40, %41 : vector<8x32xf32>
    %43 = arith.mulf %34, %16 : vector<8x32xf32>
    %44 = arith.mulf %28, %36 : vector<8x32xf32>
    %45 = arith.addf %43, %44 : vector<8x32xf32>
    %46 = math.tanh %45 : vector<8x32xf32>
    %47 = arith.mulf %42, %46 : vector<8x32xf32>
    %c4_i32 = arith.constant 4 : i32
    %48 = arith.muli %arg1, %c4_i32 : i32
    %49 = arith.addi %48, %c0_i32_18 : i32
    %c9_i32 = arith.constant 9 : i32
    %50 = arith.cmpi slt, %49, %c9_i32 : i32
    %51 = arith.select %50, %47, %14 : vector<8x32xf32>
    %52 = arith.select %50, %45, %16 : vector<8x32xf32>
    %53 = arith.truncf %51 : vector<8x32xf32> to vector<8x32xbf16>
    %54 = arith.index_cast %c0_i32_18 : i32 to index
    %c0_25 = arith.constant 0 : index
    %c0_26 = arith.constant 0 : index
    %55 = vector.load %arg14[%54, %c0_25, %c0_26] : memref<4x8x32xbf16, #tpu.memory_space<vmem>>, vector<1x8x32xbf16>
    %56 = vector.shape_cast %55 : vector<1x8x32xbf16> to vector<8x32xbf16>
    %57 = vector.shape_cast %53 : vector<8x32xbf16> to vector<1x8x32xbf16>
    tpu.vector_store %arg14[%54, %c0_25, %c0_26], %57 {strides = array<i32>} : memref<4x8x32xbf16, #tpu.memory_space<vmem>>, vector<1x8x32xbf16>,
    %c1_i32 = arith.constant 1 : i32
    %58 = arith.index_cast %c1_i32 : i32 to index
    %c0_27 = arith.constant 0 : index
    %c0_28 = arith.constant 0 : index
    %59 = vector.load %arg13[%58, %c0_27, %c0_28] : memref<4x8x128xf32, #tpu.memory_space<vmem>>, vector<1x8x128xf32>
    %60 = vector.shape_cast %59 : vector<1x8x128xf32> to vector<8x128xf32>
    %61 = arith.truncf %51 : vector<8x32xf32> to vector<8x32xbf16>
    %cst_29 = arith.constant dense<0.000000e+00> : vector<8x128xf32>
    %62 = tpu.matmul %61, %12, %cst_29 {dimension_numbers = #tpu.dot_dimension_numbers<[1], [0], [0], [1], [0, 0, 1, 1], [], []>} : vector<8x32xbf16>, vector<32x128xbf16>, vector<8x128xf32> -> vector<8x128xf32>
    %63 = arith.addf %60, %62 : vector<8x128xf32>
    %64 = vector.extract_strided_slice %63 {offsets = [0, 0], sizes = [8, 32], strides = [1, 1]} : vector<8x128xf32> to vector<8x32xf32>
    %65 = arith.negf %64 : vector<8x32xf32>
    %66 = math.exp %65 : vector<8x32xf32>
    %cst_30 = arith.constant 1.000000e+00 : f32
    %67 = vector.broadcast %cst_30 : f32 to vector<8x32xf32>
    %68 = arith.addf %67, %66 : vector<8x32xf32>
    %69 = arith.divf %67, %68 : vector<8x32xf32>
    %70 = vector.extract_strided_slice %63 {offsets = [0, 32], sizes = [8, 32], strides = [1, 1]} : vector<8x128xf32> to vector<8x32xf32>
    %71 = arith.negf %70 : vector<8x32xf32>
    %72 = math.exp %71 : vector<8x32xf32>
    %cst_31 = arith.constant 1.000000e+00 : f32
    %73 = vector.broadcast %cst_31 : f32 to vector<8x32xf32>
    %74 = arith.addf %73, %72 : vector<8x32xf32>
    %75 = arith.divf %73, %74 : vector<8x32xf32>
    %76 = vector.extract_strided_slice %63 {offsets = [0, 64], sizes = [8, 32], strides = [1, 1]} : vector<8x128xf32> to vector<8x32xf32>
    %77 = math.tanh %76 : vector<8x32xf32>
    %78 = vector.extract_strided_slice %63 {offsets = [0, 96], sizes = [8, 32], strides = [1, 1]} : vector<8x128xf32> to vector<8x32xf32>
    %79 = arith.negf %78 : vector<8x32xf32>
    %80 = math.exp %79 : vector<8x32xf32>
    %cst_32 = arith.constant 1.000000e+00 : f32
    %81 = vector.broadcast %cst_32 : f32 to vector<8x32xf32>
    %82 = arith.addf %81, %80 : vector<8x32xf32>
    %83 = arith.divf %81, %82 : vector<8x32xf32>
    %84 = arith.mulf %75, %52 : vector<8x32xf32>
    %85 = arith.mulf %69, %77 : vector<8x32xf32>
    %86 = arith.addf %84, %85 : vector<8x32xf32>
    %87 = math.tanh %86 : vector<8x32xf32>
    %88 = arith.mulf %83, %87 : vector<8x32xf32>
    %c4_i32_33 = arith.constant 4 : i32
    %89 = arith.muli %arg1, %c4_i32_33 : i32
    %90 = arith.addi %89, %c1_i32 : i32
    %c9_i32_34 = arith.constant 9 : i32
    %91 = arith.cmpi slt, %90, %c9_i32_34 : i32
    %92 = arith.select %91, %88, %51 : vector<8x32xf32>
    %93 = arith.select %91, %86, %52 : vector<8x32xf32>
    %94 = arith.truncf %92 : vector<8x32xf32> to vector<8x32xbf16>
    %95 = arith.index_cast %c1_i32 : i32 to index
    %c0_35 = arith.constant 0 : index
    %c0_36 = arith.constant 0 : index
    %96 = vector.load %arg14[%95, %c0_35, %c0_36] : memref<4x8x32xbf16, #tpu.memory_space<vmem>>, vector<1x8x32xbf16>
    %97 = vector.shape_cast %96 : vector<1x8x32xbf16> to vector<8x32xbf16>
    %98 = vector.shape_cast %94 : vector<8x32xbf16> to vector<1x8x32xbf16>
    tpu.vector_store %arg14[%95, %c0_35, %c0_36], %98 {strides = array<i32>} : memref<4x8x32xbf16, #tpu.memory_space<vmem>>, vector<1x8x32xbf16>,
    %c2_i32 = arith.constant 2 : i32
    %99 = arith.index_cast %c2_i32 : i32 to index
    %c0_37 = arith.constant 0 : index
    %c0_38 = arith.constant 0 : index
    %100 = vector.load %arg13[%99, %c0_37, %c0_38] : memref<4x8x128xf32, #tpu.memory_space<vmem>>, vector<1x8x128xf32>
    %101 = vector.shape_cast %100 : vector<1x8x128xf32> to vector<8x128xf32>
    %102 = arith.truncf %92 : vector<8x32xf32> to vector<8x32xbf16>
    %cst_39 = arith.constant dense<0.000000e+00> : vector<8x128xf32>
    %103 = tpu.matmul %102, %12, %cst_39 {dimension_numbers = #tpu.dot_dimension_numbers<[1], [0], [0], [1], [0, 0, 1, 1], [], []>} : vector<8x32xbf16>, vector<32x128xbf16>, vector<8x128xf32> -> vector<8x128xf32>
    %104 = arith.addf %101, %103 : vector<8x128xf32>
    %105 = vector.extract_strided_slice %104 {offsets = [0, 0], sizes = [8, 32], strides = [1, 1]} : vector<8x128xf32> to vector<8x32xf32>
    %106 = arith.negf %105 : vector<8x32xf32>
    %107 = math.exp %106 : vector<8x32xf32>
    %cst_40 = arith.constant 1.000000e+00 : f32
    %108 = vector.broadcast %cst_40 : f32 to vector<8x32xf32>
    %109 = arith.addf %108, %107 : vector<8x32xf32>
    %110 = arith.divf %108, %109 : vector<8x32xf32>
    %111 = vector.extract_strided_slice %104 {offsets = [0, 32], sizes = [8, 32], strides = [1, 1]} : vector<8x128xf32> to vector<8x32xf32>
    %112 = arith.negf %111 : vector<8x32xf32>
    %113 = math.exp %112 : vector<8x32xf32>
    %cst_41 = arith.constant 1.000000e+00 : f32
    %114 = vector.broadcast %cst_41 : f32 to vector<8x32xf32>
    %115 = arith.addf %114, %113 : vector<8x32xf32>
    %116 = arith.divf %114, %115 : vector<8x32xf32>
    %117 = vector.extract_strided_slice %104 {offsets = [0, 64], sizes = [8, 32], strides = [1, 1]} : vector<8x128xf32> to vector<8x32xf32>
    %118 = math.tanh %117 : vector<8x32xf32>
    %119 = vector.extract_strided_slice %104 {offsets = [0, 96], sizes = [8, 32], strides = [1, 1]} : vector<8x128xf32> to vector<8x32xf32>
    %120 = arith.negf %119 : vector<8x32xf32>
    %121 = math.exp %120 : vector<8x32xf32>
    %cst_42 = arith.constant 1.000000e+00 : f32
    %122 = vector.broadcast %cst_42 : f32 to vector<8x32xf32>
    %123 = arith.addf %122, %121 : vector<8x32xf32>
    %124 = arith.divf %122, %123 : vector<8x32xf32>
    %125 = arith.mulf %116, %93 : vector<8x32xf32>
    %126 = arith.mulf %110, %118 : vector<8x32xf32>
    %127 = arith.addf %125, %126 : vector<8x32xf32>
    %128 = math.tanh %127 : vector<8x32xf32>
    %129 = arith.mulf %124, %128 : vector<8x32xf32>
    %c4_i32_43 = arith.constant 4 : i32
    %130 = arith.muli %arg1, %c4_i32_43 : i32
    %131 = arith.addi %130, %c2_i32 : i32
    %c9_i32_44 = arith.constant 9 : i32
    %132 = arith.cmpi slt, %131, %c9_i32_44 : i32
    %133 = arith.select %132, %129, %92 : vector<8x32xf32>
    %134 = arith.select %132, %127, %93 : vector<8x32xf32>
    %135 = arith.truncf %133 : vector<8x32xf32> to vector<8x32xbf16>
    %136 = arith.index_cast %c2_i32 : i32 to index
    %c0_45 = arith.constant 0 : index
    %c0_46 = arith.constant 0 : index
    %137 = vector.load %arg14[%136, %c0_45, %c0_46] : memref<4x8x32xbf16, #tpu.memory_space<vmem>>, vector<1x8x32xbf16>
    %138 = vector.shape_cast %137 : vector<1x8x32xbf16> to vector<8x32xbf16>
    %139 = vector.shape_cast %135 : vector<8x32xbf16> to vector<1x8x32xbf16>
    tpu.vector_store %arg14[%136, %c0_45, %c0_46], %139 {strides = array<i32>} : memref<4x8x32xbf16, #tpu.memory_space<vmem>>, vector<1x8x32xbf16>,
    %c3_i32 = arith.constant 3 : i32
    %140 = arith.index_cast %c3_i32 : i32 to index
    %c0_47 = arith.constant 0 : index
    %c0_48 = arith.constant 0 : index
    %141 = vector.load %arg13[%140, %c0_47, %c0_48] : memref<4x8x128xf32, #tpu.memory_space<vmem>>, vector<1x8x128xf32>
    %142 = vector.shape_cast %141 : vector<1x8x128xf32> to vector<8x128xf32>
    %143 = arith.truncf %133 : vector<8x32xf32> to vector<8x32xbf16>
    %cst_49 = arith.constant dense<0.000000e+00> : vector<8x128xf32>
    %144 = tpu.matmul %143, %12, %cst_49 {dimension_numbers = #tpu.dot_dimension_numbers<[1], [0], [0], [1], [0, 0, 1, 1], [], []>} : vector<8x32xbf16>, vector<32x128xbf16>, vector<8x128xf32> -> vector<8x128xf32>
    %145 = arith.addf %142, %144 : vector<8x128xf32>
    %146 = vector.extract_strided_slice %145 {offsets = [0, 0], sizes = [8, 32], strides = [1, 1]} : vector<8x128xf32> to vector<8x32xf32>
    %147 = arith.negf %146 : vector<8x32xf32>
    %148 = math.exp %147 : vector<8x32xf32>
    %cst_50 = arith.constant 1.000000e+00 : f32
    %149 = vector.broadcast %cst_50 : f32 to vector<8x32xf32>
    %150 = arith.addf %149, %148 : vector<8x32xf32>
    %151 = arith.divf %149, %150 : vector<8x32xf32>
    %152 = vector.extract_strided_slice %145 {offsets = [0, 32], sizes = [8, 32], strides = [1, 1]} : vector<8x128xf32> to vector<8x32xf32>
    %153 = arith.negf %152 : vector<8x32xf32>
    %154 = math.exp %153 : vector<8x32xf32>
    %cst_51 = arith.constant 1.000000e+00 : f32
    %155 = vector.broadcast %cst_51 : f32 to vector<8x32xf32>
    %156 = arith.addf %155, %154 : vector<8x32xf32>
    %157 = arith.divf %155, %156 : vector<8x32xf32>
    %158 = vector.extract_strided_slice %145 {offsets = [0, 64], sizes = [8, 32], strides = [1, 1]} : vector<8x128xf32> to vector<8x32xf32>
    %159 = math.tanh %158 : vector<8x32xf32>
    %160 = vector.extract_strided_slice %145 {offsets = [0, 96], sizes = [8, 32], strides = [1, 1]} : vector<8x128xf32> to vector<8x32xf32>
    %161 = arith.negf %160 : vector<8x32xf32>
    %162 = math.exp %161 : vector<8x32xf32>
    %cst_52 = arith.constant 1.000000e+00 : f32
    %163 = vector.broadcast %cst_52 : f32 to vector<8x32xf32>
    %164 = arith.addf %163, %162 : vector<8x32xf32>
    %165 = arith.divf %163, %164 : vector<8x32xf32>
    %166 = arith.mulf %157, %134 : vector<8x32xf32>
    %167 = arith.mulf %151, %159 : vector<8x32xf32>
    %168 = arith.addf %166, %167 : vector<8x32xf32>
    %169 = math.tanh %168 : vector<8x32xf32>
    %170 = arith.mulf %165, %169 : vector<8x32xf32>
    %c4_i32_53 = arith.constant 4 : i32
    %171 = arith.muli %arg1, %c4_i32_53 : i32
    %172 = arith.addi %171, %c3_i32 : i32
    %c9_i32_54 = arith.constant 9 : i32
    %173 = arith.cmpi slt, %172, %c9_i32_54 : i32
    %174 = arith.select %173, %170, %133 : vector<8x32xf32>
    %175 = arith.select %173, %168, %134 : vector<8x32xf32>
    %176 = arith.truncf %174 : vector<8x32xf32> to vector<8x32xbf16>
    %177 = arith.index_cast %c3_i32 : i32 to index
    %c0_55 = arith.constant 0 : index
    %c0_56 = arith.constant 0 : index
    %178 = vector.load %arg14[%177, %c0_55, %c0_56] : memref<4x8x32xbf16, #tpu.memory_space<vmem>>, vector<1x8x32xbf16>
    %179 = vector.shape_cast %178 : vector<1x8x32xbf16> to vector<8x32xbf16>
    %180 = vector.shape_cast %176 : vector<8x32xbf16> to vector<1x8x32xbf16>
    tpu.vector_store %arg14[%177, %c0_55, %c0_56], %180 {strides = array<i32>} : memref<4x8x32xbf16, #tpu.memory_space<vmem>>, vector<1x8x32xbf16>,
    %c4_i32_57 = arith.constant 4 : i32
    %c0_58 = arith.constant 0 : index
    %c0_59 = arith.constant 0 : index
    %c0_60 = arith.constant 0 : index
    %181 = vector.load %arg11[%c0_58, %c0_59, %c0_60] : memref<2x8x32xf32, #tpu.memory_space<vmem>>, vector<1x8x32xf32>
    %182 = vector.shape_cast %181 : vector<1x8x32xf32> to vector<8x32xf32>
    %183 = vector.shape_cast %174 : vector<8x32xf32> to vector<1x8x32xf32>
    tpu.vector_store %arg11[%c0_58, %c0_59, %c0_60], %183 {strides = array<i32>} : memref<2x8x32xf32, #tpu.memory_space<vmem>>, vector<1x8x32xf32>,
    %c0_61 = arith.constant 0 : index
    %c0_62 = arith.constant 0 : index
    %c0_63 = arith.constant 0 : index
    %184 = vector.load %arg12[%c0_61, %c0_62, %c0_63] : memref<2x8x32xf32, #tpu.memory_space<vmem>>, vector<1x8x32xf32>
    %185 = vector.shape_cast %184 : vector<1x8x32xf32> to vector<8x32xf32>
    %186 = vector.shape_cast %175 : vector<8x32xf32> to vector<1x8x32xf32>
    tpu.vector_store %arg12[%c0_61, %c0_62, %c0_63], %186 {strides = array<i32>} : memref<2x8x32xf32, #tpu.memory_space<vmem>>, vector<1x8x32xf32>,
    %c0_64 = arith.constant 0 : index
    %c0_65 = arith.constant 0 : index
    %c0_66 = arith.constant 0 : index
    %187 = vector.load %arg14[%c0_64, %c0_65, %c0_66] : memref<4x8x32xbf16, #tpu.memory_space<vmem>>, vector<4x8x32xbf16>
    %188 = vector.shape_cast %187 : vector<4x8x32xbf16> to vector<32x32xbf16>
    %c0_67 = arith.constant 0 : index
    %c0_68 = arith.constant 0 : index
    %189 = vector.load %arg4[%c0_67, %c0_68] : memref<32x128xbf16, #tpu.memory_space<vmem>>, vector<32x128xbf16>
    %cst_69 = arith.constant dense<0.000000e+00> : vector<32x128xf32>
    %190 = tpu.matmul %188, %189, %cst_69 {dimension_numbers = #tpu.dot_dimension_numbers<[1], [0], [0], [1], [0, 0, 1, 1], [], []>} : vector<32x32xbf16>, vector<32x128xbf16>, vector<32x128xf32> -> vector<32x128xf32>
    %c0_70 = arith.constant 0 : index
    %c0_71 = arith.constant 0 : index
    %191 = vector.load %arg8[%c0_70, %c0_71] : memref<1x128xf32, #tpu.memory_space<vmem>>, vector<1x128xf32>
    %192 = vector.broadcast %191 : vector<1x128xf32> to vector<32x128xf32>
    %193 = arith.addf %190, %192 : vector<32x128xf32>
    %194 = vector.shape_cast %193 : vector<32x128xf32> to vector<4x8x128xf32>
    %c0_72 = arith.constant 0 : index
    %c0_73 = arith.constant 0 : index
    %c0_74 = arith.constant 0 : index
    %195 = vector.load %arg13[%c0_72, %c0_73, %c0_74] : memref<4x8x128xf32, #tpu.memory_space<vmem>>, vector<4x8x128xf32>
    tpu.vector_store %arg13[%c0_72, %c0_73, %c0_74], %194 {strides = array<i32>} : memref<4x8x128xf32, #tpu.memory_space<vmem>>, vector<4x8x128xf32>,
    %c0_75 = arith.constant 0 : index
    %c0_76 = arith.constant 0 : index
    %196 = vector.load %arg6[%c0_75, %c0_76] : memref<32x128xbf16, #tpu.memory_space<vmem>>, vector<32x128xbf16>
    %c1 = arith.constant 1 : index
    %c0_77 = arith.constant 0 : index
    %c0_78 = arith.constant 0 : index
    %197 = vector.load %arg11[%c1, %c0_77, %c0_78] : memref<2x8x32xf32, #tpu.memory_space<vmem>>, vector<1x8x32xf32>
    %198 = vector.shape_cast %197 : vector<1x8x32xf32> to vector<8x32xf32>
    %c1_79 = arith.constant 1 : index
    %c0_80 = arith.constant 0 : index
    %c0_81 = arith.constant 0 : index
    %199 = vector.load %arg12[%c1_79, %c0_80, %c0_81] : memref<2x8x32xf32, #tpu.memory_space<vmem>>, vector<1x8x32xf32>
    %200 = vector.shape_cast %199 : vector<1x8x32xf32> to vector<8x32xf32>
    %c0_i32_82 = arith.constant 0 : i32
    %201 = arith.index_cast %c0_i32_82 : i32 to index
    %c0_83 = arith.constant 0 : index
    %c0_84 = arith.constant 0 : index
    %202 = vector.load %arg13[%201, %c0_83, %c0_84] : memref<4x8x128xf32, #tpu.memory_space<vmem>>, vector<1x8x128xf32>
    %203 = vector.shape_cast %202 : vector<1x8x128xf32> to vector<8x128xf32>
    %204 = arith.truncf %198 : vector<8x32xf32> to vector<8x32xbf16>
    %cst_85 = arith.constant dense<0.000000e+00> : vector<8x128xf32>
    %205 = tpu.matmul %204, %196, %cst_85 {dimension_numbers = #tpu.dot_dimension_numbers<[1], [0], [0], [1], [0, 0, 1, 1], [], []>} : vector<8x32xbf16>, vector<32x128xbf16>, vector<8x128xf32> -> vector<8x128xf32>
    %206 = arith.addf %203, %205 : vector<8x128xf32>
    %207 = vector.extract_strided_slice %206 {offsets = [0, 0], sizes = [8, 32], strides = [1, 1]} : vector<8x128xf32> to vector<8x32xf32>
    %208 = arith.negf %207 : vector<8x32xf32>
    %209 = math.exp %208 : vector<8x32xf32>
    %cst_86 = arith.constant 1.000000e+00 : f32
    %210 = vector.broadcast %cst_86 : f32 to vector<8x32xf32>
    %211 = arith.addf %210, %209 : vector<8x32xf32>
    %212 = arith.divf %210, %211 : vector<8x32xf32>
    %213 = vector.extract_strided_slice %206 {offsets = [0, 32], sizes = [8, 32], strides = [1, 1]} : vector<8x128xf32> to vector<8x32xf32>
    %214 = arith.negf %213 : vector<8x32xf32>
    %215 = math.exp %214 : vector<8x32xf32>
    %cst_87 = arith.constant 1.000000e+00 : f32
    %216 = vector.broadcast %cst_87 : f32 to vector<8x32xf32>
    %217 = arith.addf %216, %215 : vector<8x32xf32>
    %218 = arith.divf %216, %217 : vector<8x32xf32>
    %219 = vector.extract_strided_slice %206 {offsets = [0, 64], sizes = [8, 32], strides = [1, 1]} : vector<8x128xf32> to vector<8x32xf32>
    %220 = math.tanh %219 : vector<8x32xf32>
    %221 = vector.extract_strided_slice %206 {offsets = [0, 96], sizes = [8, 32], strides = [1, 1]} : vector<8x128xf32> to vector<8x32xf32>
    %222 = arith.negf %221 : vector<8x32xf32>
    %223 = math.exp %222 : vector<8x32xf32>
    %cst_88 = arith.constant 1.000000e+00 : f32
    %224 = vector.broadcast %cst_88 : f32 to vector<8x32xf32>
    %225 = arith.addf %224, %223 : vector<8x32xf32>
    %226 = arith.divf %224, %225 : vector<8x32xf32>
    %227 = arith.mulf %218, %200 : vector<8x32xf32>
    %228 = arith.mulf %212, %220 : vector<8x32xf32>
    %229 = arith.addf %227, %228 : vector<8x32xf32>
    %230 = math.tanh %229 : vector<8x32xf32>
    %231 = arith.mulf %226, %230 : vector<8x32xf32>
    %c4_i32_89 = arith.constant 4 : i32
    %232 = arith.muli %arg1, %c4_i32_89 : i32
    %233 = arith.addi %232, %c0_i32_82 : i32
    %c9_i32_90 = arith.constant 9 : i32
    %234 = arith.cmpi slt, %233, %c9_i32_90 : i32
    %235 = arith.select %234, %231, %198 : vector<8x32xf32>
    %236 = arith.select %234, %229, %200 : vector<8x32xf32>
    %c1_i32_91 = arith.constant 1 : i32
    %237 = arith.index_cast %c1_i32_91 : i32 to index
    %c0_92 = arith.constant 0 : index
    %c0_93 = arith.constant 0 : index
    %238 = vector.load %arg13[%237, %c0_92, %c0_93] : memref<4x8x128xf32, #tpu.memory_space<vmem>>, vector<1x8x128xf32>
    %239 = vector.shape_cast %238 : vector<1x8x128xf32> to vector<8x128xf32>
    %240 = arith.truncf %235 : vector<8x32xf32> to vector<8x32xbf16>
    %cst_94 = arith.constant dense<0.000000e+00> : vector<8x128xf32>
    %241 = tpu.matmul %240, %196, %cst_94 {dimension_numbers = #tpu.dot_dimension_numbers<[1], [0], [0], [1], [0, 0, 1, 1], [], []>} : vector<8x32xbf16>, vector<32x128xbf16>, vector<8x128xf32> -> vector<8x128xf32>
    %242 = arith.addf %239, %241 : vector<8x128xf32>
    %243 = vector.extract_strided_slice %242 {offsets = [0, 0], sizes = [8, 32], strides = [1, 1]} : vector<8x128xf32> to vector<8x32xf32>
    %244 = arith.negf %243 : vector<8x32xf32>
    %245 = math.exp %244 : vector<8x32xf32>
    %cst_95 = arith.constant 1.000000e+00 : f32
    %246 = vector.broadcast %cst_95 : f32 to vector<8x32xf32>
    %247 = arith.addf %246, %245 : vector<8x32xf32>
    %248 = arith.divf %246, %247 : vector<8x32xf32>
    %249 = vector.extract_strided_slice %242 {offsets = [0, 32], sizes = [8, 32], strides = [1, 1]} : vector<8x128xf32> to vector<8x32xf32>
    %250 = arith.negf %249 : vector<8x32xf32>
    %251 = math.exp %250 : vector<8x32xf32>
    %cst_96 = arith.constant 1.000000e+00 : f32
    %252 = vector.broadcast %cst_96 : f32 to vector<8x32xf32>
    %253 = arith.addf %252, %251 : vector<8x32xf32>
    %254 = arith.divf %252, %253 : vector<8x32xf32>
    %255 = vector.extract_strided_slice %242 {offsets = [0, 64], sizes = [8, 32], strides = [1, 1]} : vector<8x128xf32> to vector<8x32xf32>
    %256 = math.tanh %255 : vector<8x32xf32>
    %257 = vector.extract_strided_slice %242 {offsets = [0, 96], sizes = [8, 32], strides = [1, 1]} : vector<8x128xf32> to vector<8x32xf32>
    %258 = arith.negf %257 : vector<8x32xf32>
    %259 = math.exp %258 : vector<8x32xf32>
    %cst_97 = arith.constant 1.000000e+00 : f32
    %260 = vector.broadcast %cst_97 : f32 to vector<8x32xf32>
    %261 = arith.addf %260, %259 : vector<8x32xf32>
    %262 = arith.divf %260, %261 : vector<8x32xf32>
    %263 = arith.mulf %254, %236 : vector<8x32xf32>
    %264 = arith.mulf %248, %256 : vector<8x32xf32>
    %265 = arith.addf %263, %264 : vector<8x32xf32>
    %266 = math.tanh %265 : vector<8x32xf32>
    %267 = arith.mulf %262, %266 : vector<8x32xf32>
    %c4_i32_98 = arith.constant 4 : i32
    %268 = arith.muli %arg1, %c4_i32_98 : i32
    %269 = arith.addi %268, %c1_i32_91 : i32
    %c9_i32_99 = arith.constant 9 : i32
    %270 = arith.cmpi slt, %269, %c9_i32_99 : i32
    %271 = arith.select %270, %267, %235 : vector<8x32xf32>
    %272 = arith.select %270, %265, %236 : vector<8x32xf32>
    %c2_i32_100 = arith.constant 2 : i32
    %273 = arith.index_cast %c2_i32_100 : i32 to index
    %c0_101 = arith.constant 0 : index
    %c0_102 = arith.constant 0 : index
    %274 = vector.load %arg13[%273, %c0_101, %c0_102] : memref<4x8x128xf32, #tpu.memory_space<vmem>>, vector<1x8x128xf32>
    %275 = vector.shape_cast %274 : vector<1x8x128xf32> to vector<8x128xf32>
    %276 = arith.truncf %271 : vector<8x32xf32> to vector<8x32xbf16>
    %cst_103 = arith.constant dense<0.000000e+00> : vector<8x128xf32>
    %277 = tpu.matmul %276, %196, %cst_103 {dimension_numbers = #tpu.dot_dimension_numbers<[1], [0], [0], [1], [0, 0, 1, 1], [], []>} : vector<8x32xbf16>, vector<32x128xbf16>, vector<8x128xf32> -> vector<8x128xf32>
    %278 = arith.addf %275, %277 : vector<8x128xf32>
    %279 = vector.extract_strided_slice %278 {offsets = [0, 0], sizes = [8, 32], strides = [1, 1]} : vector<8x128xf32> to vector<8x32xf32>
    %280 = arith.negf %279 : vector<8x32xf32>
    %281 = math.exp %280 : vector<8x32xf32>
    %cst_104 = arith.constant 1.000000e+00 : f32
    %282 = vector.broadcast %cst_104 : f32 to vector<8x32xf32>
    %283 = arith.addf %282, %281 : vector<8x32xf32>
    %284 = arith.divf %282, %283 : vector<8x32xf32>
    %285 = vector.extract_strided_slice %278 {offsets = [0, 32], sizes = [8, 32], strides = [1, 1]} : vector<8x128xf32> to vector<8x32xf32>
    %286 = arith.negf %285 : vector<8x32xf32>
    %287 = math.exp %286 : vector<8x32xf32>
    %cst_105 = arith.constant 1.000000e+00 : f32
    %288 = vector.broadcast %cst_105 : f32 to vector<8x32xf32>
    %289 = arith.addf %288, %287 : vector<8x32xf32>
    %290 = arith.divf %288, %289 : vector<8x32xf32>
    %291 = vector.extract_strided_slice %278 {offsets = [0, 64], sizes = [8, 32], strides = [1, 1]} : vector<8x128xf32> to vector<8x32xf32>
    %292 = math.tanh %291 : vector<8x32xf32>
    %293 = vector.extract_strided_slice %278 {offsets = [0, 96], sizes = [8, 32], strides = [1, 1]} : vector<8x128xf32> to vector<8x32xf32>
    %294 = arith.negf %293 : vector<8x32xf32>
    %295 = math.exp %294 : vector<8x32xf32>
    %cst_106 = arith.constant 1.000000e+00 : f32
    %296 = vector.broadcast %cst_106 : f32 to vector<8x32xf32>
    %297 = arith.addf %296, %295 : vector<8x32xf32>
    %298 = arith.divf %296, %297 : vector<8x32xf32>
    %299 = arith.mulf %290, %272 : vector<8x32xf32>
    %300 = arith.mulf %284, %292 : vector<8x32xf32>
    %301 = arith.addf %299, %300 : vector<8x32xf32>
    %302 = math.tanh %301 : vector<8x32xf32>
    %303 = arith.mulf %298, %302 : vector<8x32xf32>
    %c4_i32_107 = arith.constant 4 : i32
    %304 = arith.muli %arg1, %c4_i32_107 : i32
    %305 = arith.addi %304, %c2_i32_100 : i32
    %c9_i32_108 = arith.constant 9 : i32
    %306 = arith.cmpi slt, %305, %c9_i32_108 : i32
    %307 = arith.select %306, %303, %271 : vector<8x32xf32>
    %308 = arith.select %306, %301, %272 : vector<8x32xf32>
    %c3_i32_109 = arith.constant 3 : i32
    %309 = arith.index_cast %c3_i32_109 : i32 to index
    %c0_110 = arith.constant 0 : index
    %c0_111 = arith.constant 0 : index
    %310 = vector.load %arg13[%309, %c0_110, %c0_111] : memref<4x8x128xf32, #tpu.memory_space<vmem>>, vector<1x8x128xf32>
    %311 = vector.shape_cast %310 : vector<1x8x128xf32> to vector<8x128xf32>
    %312 = arith.truncf %307 : vector<8x32xf32> to vector<8x32xbf16>
    %cst_112 = arith.constant dense<0.000000e+00> : vector<8x128xf32>
    %313 = tpu.matmul %312, %196, %cst_112 {dimension_numbers = #tpu.dot_dimension_numbers<[1], [0], [0], [1], [0, 0, 1, 1], [], []>} : vector<8x32xbf16>, vector<32x128xbf16>, vector<8x128xf32> -> vector<8x128xf32>
    %314 = arith.addf %311, %313 : vector<8x128xf32>
    %315 = vector.extract_strided_slice %314 {offsets = [0, 0], sizes = [8, 32], strides = [1, 1]} : vector<8x128xf32> to vector<8x32xf32>
    %316 = arith.negf %315 : vector<8x32xf32>
    %317 = math.exp %316 : vector<8x32xf32>
    %cst_113 = arith.constant 1.000000e+00 : f32
    %318 = vector.broadcast %cst_113 : f32 to vector<8x32xf32>
    %319 = arith.addf %318, %317 : vector<8x32xf32>
    %320 = arith.divf %318, %319 : vector<8x32xf32>
    %321 = vector.extract_strided_slice %314 {offsets = [0, 32], sizes = [8, 32], strides = [1, 1]} : vector<8x128xf32> to vector<8x32xf32>
    %322 = arith.negf %321 : vector<8x32xf32>
    %323 = math.exp %322 : vector<8x32xf32>
    %cst_114 = arith.constant 1.000000e+00 : f32
    %324 = vector.broadcast %cst_114 : f32 to vector<8x32xf32>
    %325 = arith.addf %324, %323 : vector<8x32xf32>
    %326 = arith.divf %324, %325 : vector<8x32xf32>
    %327 = vector.extract_strided_slice %314 {offsets = [0, 64], sizes = [8, 32], strides = [1, 1]} : vector<8x128xf32> to vector<8x32xf32>
    %328 = math.tanh %327 : vector<8x32xf32>
    %329 = vector.extract_strided_slice %314 {offsets = [0, 96], sizes = [8, 32], strides = [1, 1]} : vector<8x128xf32> to vector<8x32xf32>
    %330 = arith.negf %329 : vector<8x32xf32>
    %331 = math.exp %330 : vector<8x32xf32>
    %cst_115 = arith.constant 1.000000e+00 : f32
    %332 = vector.broadcast %cst_115 : f32 to vector<8x32xf32>
    %333 = arith.addf %332, %331 : vector<8x32xf32>
    %334 = arith.divf %332, %333 : vector<8x32xf32>
    %335 = arith.mulf %326, %308 : vector<8x32xf32>
    %336 = arith.mulf %320, %328 : vector<8x32xf32>
    %337 = arith.addf %335, %336 : vector<8x32xf32>
    %338 = math.tanh %337 : vector<8x32xf32>
    %339 = arith.mulf %334, %338 : vector<8x32xf32>
    %c4_i32_116 = arith.constant 4 : i32
    %340 = arith.muli %arg1, %c4_i32_116 : i32
    %341 = arith.addi %340, %c3_i32_109 : i32
    %c9_i32_117 = arith.constant 9 : i32
    %342 = arith.cmpi slt, %341, %c9_i32_117 : i32
    %343 = arith.select %342, %339, %307 : vector<8x32xf32>
    %344 = arith.select %342, %337, %308 : vector<8x32xf32>
    %c4_i32_118 = arith.constant 4 : i32
    %c1_119 = arith.constant 1 : index
    %c0_120 = arith.constant 0 : index
    %c0_121 = arith.constant 0 : index
    %345 = vector.load %arg11[%c1_119, %c0_120, %c0_121] : memref<2x8x32xf32, #tpu.memory_space<vmem>>, vector<1x8x32xf32>
    %346 = vector.shape_cast %345 : vector<1x8x32xf32> to vector<8x32xf32>
    %347 = vector.shape_cast %343 : vector<8x32xf32> to vector<1x8x32xf32>
    tpu.vector_store %arg11[%c1_119, %c0_120, %c0_121], %347 {strides = array<i32>} : memref<2x8x32xf32, #tpu.memory_space<vmem>>, vector<1x8x32xf32>,
    %c1_122 = arith.constant 1 : index
    %c0_123 = arith.constant 0 : index
    %c0_124 = arith.constant 0 : index
    %348 = vector.load %arg12[%c1_122, %c0_123, %c0_124] : memref<2x8x32xf32, #tpu.memory_space<vmem>>, vector<1x8x32xf32>
    %349 = vector.shape_cast %348 : vector<1x8x32xf32> to vector<8x32xf32>
    %350 = vector.shape_cast %344 : vector<8x32xf32> to vector<1x8x32xf32>
    tpu.vector_store %arg12[%c1_122, %c0_123, %c0_124], %350 {strides = array<i32>} : memref<2x8x32xf32, #tpu.memory_space<vmem>>, vector<1x8x32xf32>,
    %c0_125 = arith.constant 0 : index
    %c0_126 = arith.constant 0 : index
    %c0_127 = arith.constant 0 : index
    %351 = vector.load %arg11[%c0_125, %c0_126, %c0_127] : memref<2x8x32xf32, #tpu.memory_space<vmem>>, vector<2x8x32xf32>
    %c0_128 = arith.constant 0 : index
    %c0_129 = arith.constant 0 : index
    %c0_130 = arith.constant 0 : index
    %352 = vector.load %arg9[%c0_128, %c0_129, %c0_130] : memref<2x8x32xf32, #tpu.memory_space<vmem>>, vector<2x8x32xf32>
    tpu.vector_store %arg9[%c0_128, %c0_129, %c0_130], %351 {strides = array<i32>} : memref<2x8x32xf32, #tpu.memory_space<vmem>>, vector<2x8x32xf32>,
    %c0_131 = arith.constant 0 : index
    %c0_132 = arith.constant 0 : index
    %c0_133 = arith.constant 0 : index
    %353 = vector.load %arg12[%c0_131, %c0_132, %c0_133] : memref<2x8x32xf32, #tpu.memory_space<vmem>>, vector<2x8x32xf32>
    %c0_134 = arith.constant 0 : index
    %c0_135 = arith.constant 0 : index
    %c0_136 = arith.constant 0 : index
    %354 = vector.load %arg10[%c0_134, %c0_135, %c0_136] : memref<2x8x32xf32, #tpu.memory_space<vmem>>, vector<2x8x32xf32>
    tpu.vector_store %arg10[%c0_134, %c0_135, %c0_136], %353 {strides = array<i32>} : memref<2x8x32xf32, #tpu.memory_space<vmem>>, vector<2x8x32xf32>,
    return
  }
  func.func @transform_0(%arg0: i32, %arg1: i32) -> (i32, i32, i32) {
    %c0_i32 = arith.constant 0 : i32
    %c0_i32_0 = arith.constant 0 : i32
    return %arg1, %arg0, %c0_i32 : i32, i32, i32
  }
  func.func @transform_1(%arg0: i32, %arg1: i32) -> (i32, i32) {
    %c0_i32 = arith.constant 0 : i32
    %c0_i32_0 = arith.constant 0 : i32
    %c0_i32_1 = arith.constant 0 : i32
    return %c0_i32, %c0_i32_0 : i32, i32
  }
  func.func @transform_2(%arg0: i32, %arg1: i32) -> (i32, i32) {
    %c0_i32 = arith.constant 0 : i32
    %c0_i32_0 = arith.constant 0 : i32
    %c0_i32_1 = arith.constant 0 : i32
    return %c0_i32, %c0_i32_0 : i32, i32
  }
  func.func @transform_3(%arg0: i32, %arg1: i32) -> (i32, i32) {
    %c0_i32 = arith.constant 0 : i32
    %c0_i32_0 = arith.constant 0 : i32
    %c0_i32_1 = arith.constant 0 : i32
    return %c0_i32, %c0_i32_0 : i32, i32
  }
  func.func @transform_4(%arg0: i32, %arg1: i32) -> (i32, i32) {
    %c0_i32 = arith.constant 0 : i32
    %c0_i32_0 = arith.constant 0 : i32
    %c0_i32_1 = arith.constant 0 : i32
    return %c0_i32, %c0_i32_0 : i32, i32
  }
  func.func @transform_5(%arg0: i32, %arg1: i32) -> (i32, i32) {
    %c0_i32 = arith.constant 0 : i32
    %c0_i32_0 = arith.constant 0 : i32
    %c0_i32_1 = arith.constant 0 : i32
    return %c0_i32, %c0_i32_0 : i32, i32
  }
  func.func @transform_6(%arg0: i32, %arg1: i32) -> (i32, i32) {
    %c0_i32 = arith.constant 0 : i32
    %c0_i32_0 = arith.constant 0 : i32
    %c0_i32_1 = arith.constant 0 : i32
    return %c0_i32, %c0_i32_0 : i32, i32
  }
  func.func @transform_7(%arg0: i32, %arg1: i32) -> (i32, i32, i32) {
    %c0_i32 = arith.constant 0 : i32
    %c0_i32_0 = arith.constant 0 : i32
    %c0_i32_1 = arith.constant 0 : i32
    return %c0_i32, %arg0, %c0_i32_0 : i32, i32, i32
  }
  func.func @transform_8(%arg0: i32, %arg1: i32) -> (i32, i32, i32) {
    %c0_i32 = arith.constant 0 : i32
    %c0_i32_0 = arith.constant 0 : i32
    %c0_i32_1 = arith.constant 0 : i32
    return %c0_i32, %arg0, %c0_i32_0 : i32, i32, i32
  }
}

</mosaic_0001>

<llo_original>
// kernel: tpu_custom_call.1
$region0: #{tpu_custom_call.1}
  #allocation0 [shape = 'u32[]', space=smem, size = 0x4, offset = 0x4, fixed_abs, tag = 'smem constant byte address 0x4 - core index']
  #allocation1 [shape = 'u32[72,128]{1,0:T(1,128)}', space=vmem, size = 0x9000, scoped, tag = 'internal scratch']
  #allocation2 [shape = 'f32[2,8,32]{2,1,0:T(8,128)}', space=vmem, size = 0x2000, scoped, tag = 'scratch operand']
  #allocation3 [shape = 'f32[2,8,32]{2,1,0:T(8,128)}', space=vmem, size = 0x2000, scoped, tag = 'scratch operand']
  #allocation4 [shape = 'f32[4,8,128]{2,1,0:T(8,128)}', space=vmem, size = 0x4000, scoped, tag = 'scratch operand']
  #allocation5 [shape = 'bf16[4,8,32]{2,1,0:T(8,128)(2,1)}', space=vmem, size = 0x2000, scoped, tag = 'scratch operand']
  %s0 = inlined_call_operand.hbm [shape: bf16[12,16,16], index: 0, kind: input, shape index: {}]
  %s1 = inlined_call_operand.hbm [shape: bf16[16,128], index: 1, kind: input, shape index: {}]
  %s2 = inlined_call_operand.hbm [shape: bf16[32,128], index: 2, kind: input, shape index: {}]
  %s3 = inlined_call_operand.hbm [shape: bf16[32,128], index: 3, kind: input, shape index: {}]
  %s4 = inlined_call_operand.hbm [shape: bf16[32,128], index: 4, kind: input, shape index: {}]
  %s5 = inlined_call_operand.vmem [shape: f32[1,128], index: 5, kind: input, shape index: {}]
  %s6 = inlined_call_operand.vmem [shape: f32[1,128], index: 6, kind: input, shape index: {}]
  %s7 = inlined_call_operand.hbm [shape: f32[2,16,32], index: 7, kind: output, shape index: {0}]
  %s8 = inlined_call_operand.hbm [shape: f32[2,16,32], index: 8, kind: output, shape index: {1}]
  %9 = xla_tuple %s7, %s8
  %s10 = sld [smem:[#allocation0]]
  $region93: #{tpu_custom_call.1} parent=0
    _
  %s12 = ssub.s32 1, %s10
  %s13 = scalar_select 0, %s12, %s10
  $region1: #{tpu_custom_call.1} parent=0
    #allocation6 [shape = 'u8[16384]{0}', space=vmem, size = 0x4000, scoped, tag = 'input window, operand 0']
    #allocation7 [shape = 's32[2]{0}', space=sflag, size = 0x8, scoped, tag = 'scoped memory for tpu_custom_call.1']
    #allocation8 [shape = 's32[2]{0}', space=sflag, size = 0x8, scoped, tag = 'scoped memory for tpu_custom_call.1']
    #allocation9 [shape = 'u8[4096]{0}', space=vmem, size = 0x1000, scoped, tag = 'input window, operand 1, single buffered']
    #allocation10 [shape = 's32[1]{0}', space=sflag, size = 0x4, scoped, tag = 'scoped memory for tpu_custom_call.1']
    #allocation11 [shape = 'u8[8192]{0}', space=vmem, size = 0x2000, scoped, tag = 'input window, operand 2, single buffered']
    #allocation12 [shape = 'u8[8192]{0}', space=vmem, size = 0x2000, scoped, tag = 'input window, operand 3, single buffered']
    #allocation13 [shape = 's32[1]{0}', space=sflag, size = 0x4, scoped, tag = 'scoped memory for tpu_custom_call.1']
    #allocation14 [shape = 'u8[8192]{0}', space=vmem, size = 0x2000, scoped, tag = 'input window, operand 4, single buffered']
    #allocation15 [shape = 'u8[16384]{0}', space=vmem, size = 0x4000, scoped, tag = 'output window, operand 0']
    #allocation16 [shape = 'u8[16384]{0}', space=vmem, size = 0x4000, scoped, tag = 'output window, operand 1']
    #allocation17 [shape = 's32[2]{0}', space=sflag, size = 0x8, scoped, tag = 'scoped memory for tpu_custom_call.1']
    %14 = vsyncpa [#allocation7], 0
    %s15 = scalar_lea.sflag [#allocation7], 1
    %16 = vsyncpa %s15, 0
    %17 = vsyncpa [#allocation10], 0
    %18 = vsyncpa [#allocation13], 0
    %19 = vsyncpa [#allocation8], 0
    %s20 = scalar_lea.sflag [#allocation8], 1
    %21 = vsyncpa %s20, 0
    %22 = vsyncpa [#allocation17], 0
    %s23 = scalar_lea.sflag [#allocation17], 1
    %24 = vsyncpa %s23, 0
    loop: start=0, step=1, limit=8
    $region2: #{tpu_custom_call.1} parent=1 // loop_pre_header
      _
    $region3: #{tpu_custom_call.1} parent=1 // loop_header
      %s26 = sphi 0, %s30
      %p27 = scmp.ge.s32.totalorder %s26, 8
      %s33 = sphi 0, %s45
      %s34 = sphi 0, %s41
      %s35 = sphi 0, %s33
      %s36 = sphi 0, %s34
      %s37 = sphi 0, %s35
      %s38 = sphi 0, %s36
      %s50 = sphi 0, %s52
      %s53 = sphi 0, %s50
      %s54 = sphi 0, %s53
      %s70 = sphi 0, %s54
      %s74 = sphi 0, %s74
      %s76 = sphi 0, %s74
      %s77 = sphi 0, %s76
      %s91 = sphi 0, %s77
      %s95 = sphi 0, %s95
      %s97 = sphi 0, %s95
      %s98 = sphi 0, %s97
      %s112 = sphi 0, %s98
      %s116 = sphi 0, %s116
      %s118 = sphi 0, %s116
      %s119 = sphi 0, %s118
      %s133 = sphi 0, %s119
      %s137 = sphi 0, %s137
      %s139 = sphi 0, %s137
      %s140 = sphi 0, %s139
      %s154 = sphi 0, %s140
      %s158 = sphi 0, %s158
      %s160 = sphi 0, %s158
      %s161 = sphi 0, %s160
      %s175 = sphi 0, %s161
      %s179 = sphi 0, %s179
      %s181 = sphi 0, %s179
      %s182 = sphi 0, %s181
      %s196 = sphi 0, %s182
      %s202 = sphi 0, %s204
      %s205 = sphi 0, %s202
      %s206 = sphi 0, %s205
      %s222 = sphi 0, %s206
      %s228 = sphi 0, %s230
      %s231 = sphi 0, %s228
      %s232 = sphi 0, %s231
      %s248 = sphi 0, %s232
    $region4: #{tpu_custom_call.1} parent=1 // loop_header_branch
      %29 = sbr.rel (%p27) target = $region8
    $region5: #{tpu_custom_call.1} parent=1 // loop_body
      %s31 = ssub.s32 %s26, 1
      %s32 = ssub.s32 %s26, 2
      %s39 = sadd.s32 1, %s34
      %p40 = scmp.ge.s32.totalorder %s39, 3
      %s41 = scalar_select %p40, 0, %s39
      %s42 = sadd.s32 1, %s33
      %s43 = scalar_select %p40, %s42, %s33
      %p44 = scmp.ge.s32.totalorder %s43, 2
      %s45 = scalar_select %p44, 0, %s43
      %s46 = ssub.s32 %s34, %s41
      %s47 = ssub.s32 %s33, %s45
      %s48 = sor.u32 %s46, %s47
      %p49 = scmp.eq.s32.totalorder %s48, 0
      %s51 = sadd.s32 %s50, 1
      %s52 = scalar_select %p49, %s50, %s51
      %p55 = pneg %p49
      %p56 = scmp.eq.s32.totalorder %s26, 5
      %p57 = por %p55, %p56
      %p58 = scmp.ne.s32.totalorder %s50, %s53
      %p59 = scmp.eq.s32.totalorder %s26, 0
      %p60 = por %p58, %p59
      %p61 = scmp.ne.s32.totalorder %s50, %s53
      %p62 = scmp.eq.s32.totalorder %s31, 5
      %p63 = por %p61, %p62
      %p64 = scmp.ne.s32.totalorder %s53, %s54
      %p65 = scmp.eq.s32.totalorder %s31, 0
      %p66 = por %p64, %p65
      %p67 = scmp.ne.s32.totalorder %s53, %s54
      %p68 = scmp.eq.s32.totalorder %s32, 5
      %p69 = por %p67, %p68
      %p71 = scmp.ne.s32.totalorder %s54, %s70
      %p72 = scmp.eq.s32.totalorder %s32, 0
      %p73 = por %p71, %p72
      %s75 = sadd.s32 %s74, 1
      %p78 = scmp.eq.s32.totalorder %s26, 5
      %p79 = scmp.ne.s32.totalorder %s74, %s76
      %p80 = scmp.eq.s32.totalorder %s26, 0
      %p81 = por %p79, %p80
      %p82 = scmp.ne.s32.totalorder %s74, %s76
      %p83 = scmp.eq.s32.totalorder %s31, 5
      %p84 = por %p82, %p83
      %p85 = scmp.ne.s32.totalorder %s76, %s77
      %p86 = scmp.eq.s32.totalorder %s31, 0
      %p87 = por %p85, %p86
      %p88 = scmp.ne.s32.totalorder %s76, %s77
      %p89 = scmp.eq.s32.totalorder %s32, 5
      %p90 = por %p88, %p89
      %p92 = scmp.ne.s32.totalorder %s77, %s91
      %p93 = scmp.eq.s32.totalorder %s32, 0
      %p94 = por %p92, %p93
      %s96 = sadd.s32 %s95, 1
      %p99 = scmp.eq.s32.totalorder %s26, 5
      %p100 = scmp.ne.s32.totalorder %s95, %s97
      %p101 = scmp.eq.s32.totalorder %s26, 0
      %p102 = por %p100, %p101
      %p103 = scmp.ne.s32.totalorder %s95, %s97
      %p104 = scmp.eq.s32.totalorder %s31, 5
      %p105 = por %p103, %p104
      %p106 = scmp.ne.s32.totalorder %s97, %s98
      %p107 = scmp.eq.s32.totalorder %s31, 0
      %p108 = por %p106, %p107
      %p109 = scmp.ne.s32.totalorder %s97, %s98
      %p110 = scmp.eq.s32.totalorder %s32, 5
      %p111 = por %p109, %p110
      %p113 = scmp.ne.s32.totalorder %s98, %s112
      %p114 = scmp.eq.s32.totalorder %s32, 0
      %p115 = por %p113, %p114
      %s117 = sadd.s32 %s116, 1
      %p120 = scmp.eq.s32.totalorder %s26, 5
      %p121 = scmp.ne.s32.totalorder %s116, %s118
      %p122 = scmp.eq.s32.totalorder %s26, 0
      %p123 = por %p121, %p122
      %p124 = scmp.ne.s32.totalorder %s116, %s118
      %p125 = scmp.eq.s32.totalorder %s31, 5
      %p126 = por %p124, %p125
      %p127 = scmp.ne.s32.totalorder %s118, %s119
      %p128 = scmp.eq.s32.totalorder %s31, 0
      %p129 = por %p127, %p128
      %p130 = scmp.ne.s32.totalorder %s118, %s119
      %p131 = scmp.eq.s32.totalorder %s32, 5
      %p132 = por %p130, %p131
      %p134 = scmp.ne.s32.totalorder %s119, %s133
      %p135 = scmp.eq.s32.totalorder %s32, 0
      %p136 = por %p134, %p135
      %s138 = sadd.s32 %s137, 1
      %p141 = scmp.eq.s32.totalorder %s26, 5
      %p142 = scmp.ne.s32.totalorder %s137, %s139
      %p143 = scmp.eq.s32.totalorder %s26, 0
      %p144 = por %p142, %p143
      %p145 = scmp.ne.s32.totalorder %s137, %s139
      %p146 = scmp.eq.s32.totalorder %s31, 5
      %p147 = por %p145, %p146
      %p148 = scmp.ne.s32.totalorder %s139, %s140
      %p149 = scmp.eq.s32.totalorder %s31, 0
      %p150 = por %p148, %p149
      %p151 = scmp.ne.s32.totalorder %s139, %s140
      %p152 = scmp.eq.s32.totalorder %s32, 5
      %p153 = por %p151, %p152
      %p155 = scmp.ne.s32.totalorder %s140, %s154
      %p156 = scmp.eq.s32.totalorder %s32, 0
      %p157 = por %p155, %p156
      %s159 = sadd.s32 %s158, 1
      %p162 = scmp.eq.s32.totalorder %s26, 5
      %p163 = scmp.ne.s32.totalorder %s158, %s160
      %p164 = scmp.eq.s32.totalorder %s26, 0
      %p165 = por %p163, %p164
      %p166 = scmp.ne.s32.totalorder %s158, %s160
      %p167 = scmp.eq.s32.totalorder %s31, 5
      %p168 = por %p166, %p167
      %p169 = scmp.ne.s32.totalorder %s160, %s161
      %p170 = scmp.eq.s32.totalorder %s31, 0
      %p171 = por %p169, %p170
      %p172 = scmp.ne.s32.totalorder %s160, %s161
      %p173 = scmp.eq.s32.totalorder %s32, 5
      %p174 = por %p172, %p173
      %p176 = scmp.ne.s32.totalorder %s161, %s175
      %p177 = scmp.eq.s32.totalorder %s32, 0
      %p178 = por %p176, %p177
      %s180 = sadd.s32 %s179, 1
      %p183 = scmp.eq.s32.totalorder %s26, 5
      %p184 = scmp.ne.s32.totalorder %s179, %s181
      %p185 = scmp.eq.s32.totalorder %s26, 0
      %p186 = por %p184, %p185
      %p187 = scmp.ne.s32.totalorder %s179, %s181
      %p188 = scmp.eq.s32.totalorder %s31, 5
      %p189 = por %p187, %p188
      %p190 = scmp.ne.s32.totalorder %s181, %s182
      %p191 = scmp.eq.s32.totalorder %s31, 0
      %p192 = por %p190, %p191
      %p193 = scmp.ne.s32.totalorder %s181, %s182
      %p194 = scmp.eq.s32.totalorder %s32, 5
      %p195 = por %p193, %p194
      %p197 = scmp.ne.s32.totalorder %s182, %s196
      %p198 = scmp.eq.s32.totalorder %s32, 0
      %p199 = por %p197, %p198
      %s200 = ssub.s32 %s33, %s45
      %p201 = scmp.eq.s32.totalorder %s200, 0
      %s203 = sadd.s32 %s202, 1
      %s204 = scalar_select %p201, %s202, %s203
      %p207 = pneg %p201
      %p208 = scmp.eq.s32.totalorder %s26, 5
      %p209 = por %p207, %p208
      %p210 = scmp.ne.s32.totalorder %s202, %s205
      %p211 = scmp.eq.s32.totalorder %s26, 0
      %p212 = por %p210, %p211
      %p213 = scmp.ne.s32.totalorder %s202, %s205
      %p214 = scmp.eq.s32.totalorder %s31, 5
      %p215 = por %p213, %p214
      %p216 = scmp.ne.s32.totalorder %s205, %s206
      %p217 = scmp.eq.s32.totalorder %s31, 0
      %p218 = por %p216, %p217
      %p219 = scmp.ne.s32.totalorder %s205, %s206
      %p220 = scmp.eq.s32.totalorder %s32, 5
      %p221 = por %p219, %p220
      %p223 = scmp.ne.s32.totalorder %s206, %s222
      %p224 = scmp.eq.s32.totalorder %s32, 0
      %p225 = por %p223, %p224
      %s226 = ssub.s32 %s33, %s45
      %p227 = scmp.eq.s32.totalorder %s226, 0
      %s229 = sadd.s32 %s228, 1
      %s230 = scalar_select %p227, %s228, %s229
      %p233 = pneg %p227
      %p234 = scmp.eq.s32.totalorder %s26, 5
      %p235 = por %p233, %p234
      %p236 = scmp.ne.s32.totalorder %s228, %s231
      %p237 = scmp.eq.s32.totalorder %s26, 0
      %p238 = por %p236, %p237
      %p239 = scmp.ne.s32.totalorder %s228, %s231
      %p240 = scmp.eq.s32.totalorder %s31, 5
      %p241 = por %p239, %p240
      %p242 = scmp.ne.s32.totalorder %s231, %s232
      %p243 = scmp.eq.s32.totalorder %s31, 0
      %p244 = por %p242, %p243
      %p245 = scmp.ne.s32.totalorder %s231, %s232
      %p246 = scmp.eq.s32.totalorder %s32, 5
      %p247 = por %p245, %p246
      %p249 = scmp.ne.s32.totalorder %s232, %s248
      %p250 = scmp.eq.s32.totalorder %s32, 0
      %p251 = por %p249, %p250
      %p252 = scmp.le.s32.totalorder 1, %s26
      %p253 = scmp.lt.s32.totalorder %s26, 7
      %p254 = pnand %p252, %p253
      %p255 = pneg %p254
      // Predicated region
      $region9: #{tpu_custom_call.1} parent=5 // pred_check
        _
      $region10: #{tpu_custom_call.1} parent=5 // pred_check_branch
        %257 = sbr.rel (%p254) target = $region12
      $region11: #{tpu_custom_call.1} parent=5 // pred_region
        %s258 = ssub.s32 %s26, 1
        // Predicated region
        $region13: #{tpu_custom_call.1} parent=11 // pred_check
          %p259 = pneg %p87
        $region14: #{tpu_custom_call.1} parent=11 // pred_check_branch
          %261 = sbr.rel (%p259) target = $region16
        $region15: #{tpu_custom_call.1} parent=11 // pred_region
          %263 = vsyncadd [#allocation10], 0
          %s264 = sshll.u32 %s1, 4
          %s265 = int_to_ptr.hbm [resolvable:$true] %s264
          %s266 = sshll.u32 [#allocation9], 4
          %s267 = int_to_ptr.vmem [resolvable:$true] %s266
          %272 = dma.hbm_to_vmem [thread:$0]  %s265, 128, %s267, [#allocation10], 64, 64, 4
        $region16: #{tpu_custom_call.1} parent=11 // pred_fallthru
          _
        // Predicated region
        $region17: #{tpu_custom_call.1} parent=11 // pred_check
          %p273 = pneg %p108
        $region18: #{tpu_custom_call.1} parent=11 // pred_check_branch
          %275 = sbr.rel (%p273) target = $region20
        $region19: #{tpu_custom_call.1} parent=11 // pred_region
          %277 = vsyncadd [#allocation10], 0
          %s278 = sshll.u32 %s2, 4
          %s279 = int_to_ptr.hbm [resolvable:$true] %s278
          %s280 = sshll.u32 [#allocation11], 4
          %s281 = int_to_ptr.vmem [resolvable:$true] %s280
          %286 = dma.hbm_to_vmem [thread:$0]  %s279, 256, %s281, [#allocation10], 64, 64, 4
        $region20: #{tpu_custom_call.1} parent=11 // pred_fallthru
          _
        // Predicated region
        $region21: #{tpu_custom_call.1} parent=11 // pred_check
          %p287 = pneg %p129
        $region22: #{tpu_custom_call.1} parent=11 // pred_check_branch
          %289 = sbr.rel (%p287) target = $region24
        $region23: #{tpu_custom_call.1} parent=11 // pred_region
          %291 = vsyncadd [#allocation13], 0
          %s292 = sshll.u32 %s3, 4
          %s293 = int_to_ptr.hbm [resolvable:$true] %s292
          %s294 = sshll.u32 [#allocation12], 4
          %s295 = int_to_ptr.vmem [resolvable:$true] %s294
          %300 = dma.hbm_to_vmem [thread:$0]  %s293, 256, %s295, [#allocation13], 64, 64, 4
        $region24: #{tpu_custom_call.1} parent=11 // pred_fallthru
          _
        // Predicated region
        $region25: #{tpu_custom_call.1} parent=11 // pred_check
          %p301 = pneg %p150
        $region26: #{tpu_custom_call.1} parent=11 // pred_check_branch
          %303 = sbr.rel (%p301) target = $region28
        $region27: #{tpu_custom_call.1} parent=11 // pred_region
          %305 = vsyncadd [#allocation13], 0
          %s306 = sshll.u32 %s4, 4
          %s307 = int_to_ptr.hbm [resolvable:$true] %s306
          %s308 = sshll.u32 [#allocation14], 4
          %s309 = int_to_ptr.vmem [resolvable:$true] %s308
          %314 = dma.hbm_to_vmem [thread:$0]  %s307, 256, %s309, [#allocation13], 64, 64, 4
        $region28: #{tpu_custom_call.1} parent=11 // pred_fallthru
          _
        // Predicated region
        $region29: #{tpu_custom_call.1} parent=11 // pred_check
          %p315 = pneg %p171
        $region30: #{tpu_custom_call.1} parent=11 // pred_check_branch
          %317 = sbr.rel (%p315) target = $region32
        $region31: #{tpu_custom_call.1} parent=11 // pred_region
          _
        $region32: #{tpu_custom_call.1} parent=11 // pred_fallthru
          _
        // Predicated region
        $region33: #{tpu_custom_call.1} parent=11 // pred_check
          %p318 = pneg %p192
        $region34: #{tpu_custom_call.1} parent=11 // pred_check_branch
          %320 = sbr.rel (%p318) target = $region36
        $region35: #{tpu_custom_call.1} parent=11 // pred_region
          _
        $region36: #{tpu_custom_call.1} parent=11 // pred_fallthru
          _
      $region12: #{tpu_custom_call.1} parent=5 // pred_fallthru
        _
      %p321 = scmp.lt.s32.totalorder %s26, 6
      // Predicated region
      $region37: #{tpu_custom_call.1} parent=5 // pred_check
        %p322 = pneg %p321
      $region38: #{tpu_custom_call.1} parent=5 // pred_check_branch
        %324 = sbr.rel (%p322) target = $region40
      $region39: #{tpu_custom_call.1} parent=5 // pred_region
        // Predicated region
        $region41: #{tpu_custom_call.1} parent=39 // pred_check
          %p325 = pneg %p60
        $region42: #{tpu_custom_call.1} parent=39 // pred_check_branch
          %327 = sbr.rel (%p325) target = $region44
        $region43: #{tpu_custom_call.1} parent=39 // pred_region
          %s328 = sand.u32 %s50, 1
          %s329 = scalar_lea.sflag [#allocation7], %s328
          %s330 = sand.u32 %s50, 1
          %s331 = smul.addr %s330, 16
          %s332 = scalar_lea.vmem [#allocation6], %s331
          %s333 = smul.u32 4, %s34
          %335 = vsyncadd %s329, 0
          %s336 = smul.addr %s333, 2
          %s337 = sadd.s32 %s33, %s336
          %s338 = smul.addr %s337, 4
          %s339 = scalar_lea.hbm %s0, %s338
          %s340 = sshll.u32 %s339, 4
          %s341 = int_to_ptr.hbm [resolvable:$true] %s340
          %s342 = sshll.u32 %s332, 4
          %s343 = int_to_ptr.vmem [resolvable:$true] %s342
          %348 = dma.hbm_to_vmem [thread:$0]  %s341, 256, %s343, %s329, 128, 64, 4
        $region44: #{tpu_custom_call.1} parent=39 // pred_fallthru
          _
      $region40: #{tpu_custom_call.1} parent=5 // pred_fallthru
        _
      %p349 = scmp.le.s32.totalorder 1, %s26
      %p350 = scmp.lt.s32.totalorder %s26, 7
      %p351 = pnand %p349, %p350
      %p352 = pneg %p351
      // Predicated region
      $region45: #{tpu_custom_call.1} parent=5 // pred_check
        _
      $region46: #{tpu_custom_call.1} parent=5 // pred_check_branch
        %354 = sbr.rel (%p351) target = $region48
      $region47: #{tpu_custom_call.1} parent=5 // pred_region
        %s355 = ssub.s32 %s26, 1
        %s356 = sand.u32 %s53, 1
        %s357 = scalar_lea.sflag [#allocation7], %s356
        %s358 = sand.u32 %s53, 1
        %s359 = smul.addr %s358, 16
        %s360 = scalar_lea.vmem [#allocation6], %s359
        // Predicated region
        $region49: #{tpu_custom_call.1} parent=47 // pred_check
          %p361 = pneg %p66
        $region50: #{tpu_custom_call.1} parent=47 // pred_check_branch
          %363 = sbr.rel (%p361) target = $region52
        $region51: #{tpu_custom_call.1} parent=47 // pred_region
          %365 = dma.done %s357, 256
        $region52: #{tpu_custom_call.1} parent=47 // pred_fallthru
          _
        // Predicated region
        $region53: #{tpu_custom_call.1} parent=47 // pred_check
          %p366 = pneg %p87
        $region54: #{tpu_custom_call.1} parent=47 // pred_check_branch
          %368 = sbr.rel (%p366) target = $region56
        $region55: #{tpu_custom_call.1} parent=47 // pred_region
          %370 = dma.done [#allocation10], 128
        $region56: #{tpu_custom_call.1} parent=47 // pred_fallthru
          _
        // Predicated region
        $region57: #{tpu_custom_call.1} parent=47 // pred_check
          %p371 = pneg %p108
        $region58: #{tpu_custom_call.1} parent=47 // pred_check_branch
          %373 = sbr.rel (%p371) target = $region60
        $region59: #{tpu_custom_call.1} parent=47 // pred_region
          %375 = dma.done [#allocation10], 256
        $region60: #{tpu_custom_call.1} parent=47 // pred_fallthru
          _
        // Predicated region
        $region61: #{tpu_custom_call.1} parent=47 // pred_check
          %p376 = pneg %p129
        $region62: #{tpu_custom_call.1} parent=47 // pred_check_branch
          %378 = sbr.rel (%p376) target = $region64
        $region63: #{tpu_custom_call.1} parent=47 // pred_region
          %380 = dma.done [#allocation13], 256
        $region64: #{tpu_custom_call.1} parent=47 // pred_fallthru
          _
        // Predicated region
        $region65: #{tpu_custom_call.1} parent=47 // pred_check
          %p381 = pneg %p150
        $region66: #{tpu_custom_call.1} parent=47 // pred_check_branch
          %383 = sbr.rel (%p381) target = $region68
        $region67: #{tpu_custom_call.1} parent=47 // pred_region
          %385 = dma.done [#allocation13], 256
        $region68: #{tpu_custom_call.1} parent=47 // pred_fallthru
          _
        %s386 = sand.u32 %s53, 1
        %s387 = scalar_lea.sflag [#allocation7], %s386
        %s388 = sand.u32 %s53, 1
        %s389 = smul.addr %s388, 16
        %s390 = scalar_lea.vmem [#allocation6], %s389
        %p391 = pneg %p66
        %p392 = pneg %p63
        %p393 = pneg %p87
        %p394 = pneg %p84
        %p395 = pneg %p108
        %p396 = pneg %p105
        %p397 = pneg %p129
        %p398 = pneg %p126
        %p399 = pneg %p150
        %p400 = pneg %p147
        %p401 = pneg %p171
        %p402 = pneg %p168
        %p403 = pneg %p192
        %p404 = pneg %p189
        %p405 = pneg %p218
        %p406 = pneg %p215
        %s407 = sand.u32 %s205, 1
        %s408 = scalar_lea.sflag [#allocation8], %s407
        %s409 = sand.u32 %s205, 1
        %s410 = smul.addr %s409, 16
        %s411 = scalar_lea.vmem [#allocation15], %s410
        %p412 = pneg %p244
        %p413 = pneg %p241
        %s414 = sand.u32 %s231, 1
        %s415 = scalar_lea.sflag [#allocation17], %s414
        %s416 = sand.u32 %s231, 1
        %s417 = smul.addr %s416, 16
        %s418 = scalar_lea.vmem [#allocation16], %s417
        %s419 = smul.u32 4, %s36
        %p421 = scmp.eq.s32.totalorder %s36, 0
        // Predicated region
        $region69: #{tpu_custom_call.1} parent=47 // pred_check
          %p422 = pneg %p421
        $region70: #{tpu_custom_call.1} parent=47 // pred_check_branch
          %424 = sbr.rel (%p422) target = $region72
        $region71: #{tpu_custom_call.1} parent=47 // pred_region
          %vm425 = vcmask 261120
          %426 = vst.msk [vmem:[#allocation2] sm:$0xff] %vm425, 0.0
          %427 = vst.msk [vmem:[#allocation2 + $0x8] sm:$0xff] %vm425, 0.0
          %428 = vst.msk [vmem:[#allocation3] sm:$0xff] %vm425, 0.0
          %429 = vst.msk [vmem:[#allocation3 + $0x8] sm:$0xff] %vm425, 0.0
        $region72: #{tpu_custom_call.1} parent=47 // pred_fallthru
          _
        %v430 = vld [vmem:[%s360] sm:$0xf]
        %v431 = vld [vmem:[%s360 + $0x4] sm:$0xf]
        %v432 = vld [vmem:[%s360 + $0x8] sm:$0xf]
        %v433 = vld [vmem:[%s360 + $0xc] sm:$0xf]
        %v434 = vld [vmem:[#allocation9] sm:$0xf]
        %v435 = vld [vmem:[#allocation9 + $0x4] sm:$0xf]
        %v436 = vld [vmem:[%s5] sm:$0x1]
        %v438 = vperm.slane %v436, 0
        %v444 = vunpack.c.l.b16 %v430
        %v445 = vunpack.c.l.b16 %v431
        %v446 = vunpack.c.l.b16 %v432
        %v447 = vunpack.c.l.b16 %v433
        %v448 = vpack.c.b16 %v445, %v444
        %v449 = vpack.c.b16 %v447, %v446
        %v452 = vunpack.c.l.b16 %v434
        %v453 = vunpack.c.l.b16 %v435
        %v454 = vpack.c.b16 %v453, %v452
        %vm456 = vcmask 130048
        %v458 = vsel %vm456, %v448, 0
        %v461 = vsel %vm456, %v449, 0
        %463 = vmatpush.bf16.msra.mxu0 0
        %464 = vmatpush.bf16.msra.mxu0 0
        %465 = vmatpush.bf16.msra.mxu0 0
        %466 = vmatpush.bf16.msra.mxu0 0
        %467 = vmatpush.bf16.msra.mxu0 0
        %468 = vmatpush.bf16.msra.mxu0 0
        %469 = vmatpush.bf16.msra.mxu0 0
        %470 = vmatpush.bf16.msra.mxu0 %v454
        %471 = vmatmul.bf16.gmra.mxu0 %v458
        %v472 = vpop.f32.mrf.mxu0
        %v473 = vadd.f32 %v438, %v472
        %v474 = vpop.f32.mrf.mxu0
        %v475 = vadd.f32 %v438, %v474
        %476 = vmatmul.bf16.gmra.mxu0 %v461
        %v477 = vpop.f32.mrf.mxu0
        %v478 = vadd.f32 %v438, %v477
        %v479 = vpop.f32.mrf.mxu0
        %v480 = vadd.f32 %v438, %v479
        %481 = vdwg.mxu0
        %482 = vst [vmem:[#allocation4] sm:$0xff] %v473
        %483 = vst [vmem:[#allocation4 + $0x8] sm:$0xff] %v475
        %484 = vst [vmem:[#allocation4 + $0x10] sm:$0xff] %v478
        %485 = vst [vmem:[#allocation4 + $0x18] sm:$0xff] %v480
        %v486 = vld [vmem:[#allocation12] sm:$0xf]
        %v487 = vld [vmem:[#allocation12 + $0x4] sm:$0xf]
        %v488 = vld [vmem:[#allocation12 + $0x8] sm:$0xf]
        %v489 = vld [vmem:[#allocation12 + $0xc] sm:$0xf]
        %v490 = vld [vmem:[#allocation2] sm:$0xff]
        %v491 = vld [vmem:[#allocation3] sm:$0xff]
        %v492 = vld [vmem:[#allocation4] sm:$0xff]
        %v493 = vpack.c.bf16 %v490, %v490
        %v498 = vunpack.c.l.b16 %v486
        %v499 = vunpack.c.l.b16 %v487
        %v500 = vunpack.c.l.b16 %v488
        %v501 = vunpack.c.l.b16 %v489
        %v502 = vpack.c.b16 %v499, %v498
        %v503 = vpack.c.b16 %v501, %v500
        %vm506 = vcmask 261120
        %v508 = vsel %vm506, %v493, 0
        %510 = vmatpush.bf16.msra.mxu0 0
        %511 = vmatpush.bf16.msra.mxu0 0
        %512 = vmatpush.bf16.msra.mxu0 0
        %513 = vmatpush.bf16.msra.mxu0 0
        %514 = vmatpush.bf16.msra.mxu0 0
        %515 = vmatpush.bf16.msra.mxu0 0
        %516 = vmatpush.bf16.msra.mxu0 %v503
        %517 = vmatpush.bf16.msra.mxu0 %v502
        %518 = vmatmul.bf16.gmra.mxu0 %v508
        %v519 = vpop.f32.mrf.mxu0
        %v520 = vadd.f32 0.0, %v519
        %v521 = vpop.f32.mrf.mxu0
        %522 = vdwg.mxu0
        %v523 = vadd.f32 %v492, %v520
        %v524 = vxor.u32 %v523, 2147483648
        %v525 = vmul.f32 %v524, 1.442695
        %v526 = vpow.pop %v525
        %v527 = vadd.f32 %v526, 1.0
        %v528 = vrcp.pop %v527
        %v529 = vmul.f32 %v527, %v528
        %v530 = vsub.f32 1.0, %v529
        %v531 = vmul.f32 %v528, %v530
        %v532 = vadd.f32 %v528, %v531
        %vm533 = vweird.f32 %v527
        %vm534 = vweird.f32 %v528
        %vm535 = vmor %vm533, %vm534
        %v536 = vsel %vm535, %v528, %v532
        %v537 = vand.u32 2147483647, %v527
        %vm538 = vcmp.eq.f32.partialorder %v537, 8.507059e+37
        %v539 = vand.u32 %v527, 2147483648
        %v540 = vor.u32 1.1754944e-38, %v539
        %v541 = vsel %vm538, %v540, %v536
        %v542 = vmul.f32 1.0, %v541
        %v543 = vtanh.pop %v523
        %545 = vrot.lane.b32.xlu0 %v491, 32
        %v546 = vpop.permute.xlu0 %545
        %v548 = vmul.f32 %v542, %v546
        %550 = vrot.lane.b32.xlu0 %v543, 64
        %v551 = vpop.permute.xlu0 %550
        %v553 = vmul.f32 %v542, %v551
        %555 = vrot.lane.b32.xlu0 %v553, 32
        %v556 = vpop.permute.xlu0 %555
        %v558 = vadd.f32 %v548, %v556
        %v559 = vtanh.pop %v558
        %561 = vrot.lane.b32.xlu0 %v559, 64
        %v562 = vpop.permute.xlu0 %561
        %v564 = vmul.f32 %v542, %v562
        %s565 = smul.u32 %s36, 4
        %p566 = scmp.lt.s32.totalorder %s565, 9
        %s567 = scalar_select %p566, 1, 0
        %v568 = vstv %s567
        %vm569 = vcmp.eq.s32.totalorder %v568, 1
        %571 = vrot.lane.b32.xlu0 %v490, 96
        %v572 = vpop.permute.xlu0 %571
        %v574 = vsel %vm569, %v564, %v572
        %v575 = vsel %vm569, %v558, %v546
        %v576 = vpack.c.bf16 %v574, %v574
        %578 = vrot.lane.b32.xlu0 %v576, 32
        %v579 = vpop.permute.xlu0 %578
        %vm581 = vcmask 257024
        %582 = vst.msk [vmem:[#allocation5] sm:$0xf] %vm581, %v579
        %s583 = scalar_lea.vmem [#allocation4], 8
        %v584 = vld [vmem:[%s583] sm:$0xff]
        %v585 = vunpack.c.l.b16 %v576
        %v586 = vpack.c.b16 %v585, %v585
        %587 = vrot.lane.b32.xlu0 %v586, 32
        %v588 = vpop.permute.xlu0 %587
        %v590 = vsel %vm506, %v588, 0
        %592 = vmatpush.bf16.msra.mxu0 0
        %593 = vmatpush.bf16.msra.mxu0 0
        %594 = vmatpush.bf16.msra.mxu0 0
        %595 = vmatpush.bf16.msra.mxu0 0
        %596 = vmatpush.bf16.msra.mxu0 0
        %597 = vmatpush.bf16.msra.mxu0 0
        %598 = vmatpush.bf16.msra.mxu0 %v503
        %599 = vmatpush.bf16.msra.mxu0 %v502
        %600 = vmatmul.bf16.gmra.mxu0 %v590
        %v601 = vpop.f32.mrf.mxu0
        %v602 = vadd.f32 0.0, %v601
        %v603 = vpop.f32.mrf.mxu0
        %604 = vdwg.mxu0
        %v605 = vadd.f32 %v584, %v602
        %v606 = vxor.u32 %v605, 2147483648
        %v607 = vmul.f32 %v606, 1.442695
        %v608 = vpow.pop %v607
        %v609 = vadd.f32 %v608, 1.0
        %v610 = vrcp.pop %v609
        %v611 = vmul.f32 %v609, %v610
        %v612 = vsub.f32 1.0, %v611
        %v613 = vmul.f32 %v610, %v612
        %v614 = vadd.f32 %v610, %v613
        %vm615 = vweird.f32 %v609
        %vm616 = vweird.f32 %v610
        %vm617 = vmor %vm615, %vm616
        %v618 = vsel %vm617, %v610, %v614
        %v619 = vand.u32 2147483647, %v609
        %vm620 = vcmp.eq.f32.partialorder %v619, 8.507059e+37
        %v621 = vand.u32 %v609, 2147483648
        %v622 = vor.u32 1.1754944e-38, %v621
        %v623 = vsel %vm620, %v622, %v618
        %v624 = vmul.f32 1.0, %v623
        %v625 = vtanh.pop %v605
        %v626 = vmul.f32 %v624, %v575
        %628 = vrot.lane.b32.xlu0 %v625, 64
        %v629 = vpop.permute.xlu0 %628
        %v631 = vmul.f32 %v624, %v629
        %633 = vrot.lane.b32.xlu0 %v631, 32
        %v634 = vpop.permute.xlu0 %633
        %v636 = vadd.f32 %v626, %v634
        %v637 = vtanh.pop %v636
        %639 = vrot.lane.b32.xlu0 %v637, 64
        %v640 = vpop.permute.xlu0 %639
        %v642 = vmul.f32 %v624, %v640
        %s643 = sadd.s32 %s565, 1
        %p644 = scmp.lt.s32.totalorder %s643, 9
        %s645 = scalar_select %p644, 1, 0
        %v646 = vstv %s645
        %vm647 = vcmp.eq.s32.totalorder %v646, 1
        %v648 = vsel %vm647, %v642, %v574
        %v649 = vsel %vm647, %v636, %v575
        %v650 = vpack.c.bf16 %v648, %v648
        %652 = vrot.lane.b32.xlu0 %v650, 32
        %v653 = vpop.permute.xlu0 %652
        %s655 = scalar_lea.vmem [#allocation5], 4
        %656 = vst.msk [vmem:[%s655] sm:$0xf] %vm581, %v653
        %s657 = scalar_lea.vmem [#allocation4], 16
        %v658 = vld [vmem:[%s657] sm:$0xff]
        %v659 = vunpack.c.l.b16 %v650
        %v660 = vpack.c.b16 %v659, %v659
        %661 = vrot.lane.b32.xlu0 %v660, 32
        %v662 = vpop.permute.xlu0 %661
        %v664 = vsel %vm506, %v662, 0
        %666 = vmatpush.bf16.msra.mxu0 0
        %667 = vmatpush.bf16.msra.mxu0 0
        %668 = vmatpush.bf16.msra.mxu0 0
        %669 = vmatpush.bf16.msra.mxu0 0
        %670 = vmatpush.bf16.msra.mxu0 0
        %671 = vmatpush.bf16.msra.mxu0 0
        %672 = vmatpush.bf16.msra.mxu0 %v503
        %673 = vmatpush.bf16.msra.mxu0 %v502
        %674 = vmatmul.bf16.gmra.mxu0 %v664
        %v675 = vpop.f32.mrf.mxu0
        %v676 = vadd.f32 0.0, %v675
        %v677 = vpop.f32.mrf.mxu0
        %678 = vdwg.mxu0
        %v679 = vadd.f32 %v658, %v676
        %v680 = vxor.u32 %v679, 2147483648
        %v681 = vmul.f32 %v680, 1.442695
        %v682 = vpow.pop %v681
        %v683 = vadd.f32 %v682, 1.0
        %v684 = vrcp.pop %v683
        %v685 = vmul.f32 %v683, %v684
        %v686 = vsub.f32 1.0, %v685
        %v687 = vmul.f32 %v684, %v686
        %v688 = vadd.f32 %v684, %v687
        %vm689 = vweird.f32 %v683
        %vm690 = vweird.f32 %v684
        %vm691 = vmor %vm689, %vm690
        %v692 = vsel %vm691, %v684, %v688
        %v693 = vand.u32 2147483647, %v683
        %vm694 = vcmp.eq.f32.partialorder %v693, 8.507059e+37
        %v695 = vand.u32 %v683, 2147483648
        %v696 = vor.u32 1.1754944e-38, %v695
        %v697 = vsel %vm694, %v696, %v692
        %v698 = vmul.f32 1.0, %v697
        %v699 = vtanh.pop %v679
        %v700 = vmul.f32 %v698, %v649
        %702 = vrot.lane.b32.xlu0 %v699, 64
        %v703 = vpop.permute.xlu0 %702
        %v705 = vmul.f32 %v698, %v703
        %707 = vrot.lane.b32.xlu0 %v705, 32
        %v708 = vpop.permute.xlu0 %707
        %v710 = vadd.f32 %v700, %v708
        %v711 = vtanh.pop %v710
        %713 = vrot.lane.b32.xlu0 %v711, 64
        %v714 = vpop.permute.xlu0 %713
        %v716 = vmul.f32 %v698, %v714
        %s717 = sadd.s32 %s565, 2
        %p718 = scmp.lt.s32.totalorder %s717, 9
        %s719 = scalar_select %p718, 1, 0
        %v720 = vstv %s719
        %vm721 = vcmp.eq.s32.totalorder %v720, 1
        %v722 = vsel %vm721, %v716, %v648
        %v723 = vsel %vm721, %v710, %v649
        %v724 = vpack.c.bf16 %v722, %v722
        %726 = vrot.lane.b32.xlu0 %v724, 32
        %v727 = vpop.permute.xlu0 %726
        %s729 = scalar_lea.vmem [#allocation5], 8
        %730 = vst.msk [vmem:[%s729] sm:$0xf] %vm581, %v727
        %s731 = scalar_lea.vmem [#allocation4], 24
        %v732 = vld [vmem:[%s731] sm:$0xff]
        %v733 = vunpack.c.l.b16 %v724
        %v734 = vpack.c.b16 %v733, %v733
        %735 = vrot.lane.b32.xlu0 %v734, 32
        %v736 = vpop.permute.xlu0 %735
        %v738 = vsel %vm506, %v736, 0
        %740 = vmatpush.bf16.msra.mxu0 0
        %741 = vmatpush.bf16.msra.mxu0 0
        %742 = vmatpush.bf16.msra.mxu0 0
        %743 = vmatpush.bf16.msra.mxu0 0
        %744 = vmatpush.bf16.msra.mxu0 0
        %745 = vmatpush.bf16.msra.mxu0 0
        %746 = vmatpush.bf16.msra.mxu0 %v503
        %747 = vmatpush.bf16.msra.mxu0 %v502
        %748 = vmatmul.bf16.gmra.mxu0 %v738
        %v749 = vpop.f32.mrf.mxu0
        %v750 = vadd.f32 0.0, %v749
        %v751 = vpop.f32.mrf.mxu0
        %752 = vdwg.mxu0
        %v753 = vadd.f32 %v732, %v750
        %v754 = vxor.u32 %v753, 2147483648
        %v755 = vmul.f32 %v754, 1.442695
        %v756 = vpow.pop %v755
        %v757 = vadd.f32 %v756, 1.0
        %v758 = vrcp.pop %v757
        %v759 = vmul.f32 %v757, %v758
        %v760 = vsub.f32 1.0, %v759
        %v761 = vmul.f32 %v758, %v760
        %v762 = vadd.f32 %v758, %v761
        %vm763 = vweird.f32 %v757
        %vm764 = vweird.f32 %v758
        %vm765 = vmor %vm763, %vm764
        %v766 = vsel %vm765, %v758, %v762
        %v767 = vand.u32 2147483647, %v757
        %vm768 = vcmp.eq.f32.partialorder %v767, 8.507059e+37
        %v769 = vand.u32 %v757, 2147483648
        %v770 = vor.u32 1.1754944e-38, %v769
        %v771 = vsel %vm768, %v770, %v766
        %v772 = vmul.f32 1.0, %v771
        %v773 = vtanh.pop %v753
        %v774 = vmul.f32 %v772, %v723
        %776 = vrot.lane.b32.xlu0 %v773, 64
        %v777 = vpop.permute.xlu0 %776
        %v779 = vmul.f32 %v772, %v777
        %781 = vrot.lane.b32.xlu0 %v779, 32
        %v782 = vpop.permute.xlu0 %781
        %v784 = vadd.f32 %v774, %v782
        %v785 = vtanh.pop %v784
        %787 = vrot.lane.b32.xlu0 %v785, 64
        %v788 = vpop.permute.xlu0 %787
        %v790 = vmul.f32 %v772, %v788
        %s791 = sadd.s32 %s565, 3
        %p792 = scmp.lt.s32.totalorder %s791, 9
        %s793 = scalar_select %p792, 1, 0
        %v794 = vstv %s793
        %vm795 = vcmp.eq.s32.totalorder %v794, 1
        %v796 = vsel %vm795, %v790, %v722
        %v797 = vsel %vm795, %v784, %v723
        %v798 = vpack.c.bf16 %v796, %v796
        %800 = vrot.lane.b32.xlu0 %v798, 32
        %v801 = vpop.permute.xlu0 %800
        %s803 = scalar_lea.vmem [#allocation5], 12
        %804 = vst.msk [vmem:[%s803] sm:$0xf] %vm581, %v801
        %806 = vrot.lane.b32.xlu0 %v796, 32
        %v807 = vpop.permute.xlu0 %806
        %809 = vst.msk [vmem:[#allocation2] sm:$0xff] %vm506, %v807
        %811 = vrot.lane.b32.xlu0 %v797, 96
        %v812 = vpop.permute.xlu0 %811
        %814 = vst.msk [vmem:[#allocation3] sm:$0xff] %vm506, %v812
        %v815 = vld [vmem:[#allocation5] sm:$0xf]
        %v816 = vld [vmem:[#allocation5 + $0x4] sm:$0xf]
        %v817 = vld [vmem:[#allocation5 + $0x8] sm:$0xf]
        %v818 = vld [vmem:[#allocation5 + $0xc] sm:$0xf]
        %v819 = vld [vmem:[#allocation11] sm:$0xf]
        %v820 = vld [vmem:[#allocation11 + $0x4] sm:$0xf]
        %v821 = vld [vmem:[#allocation11 + $0x8] sm:$0xf]
        %v822 = vld [vmem:[#allocation11 + $0xc] sm:$0xf]
        %v823 = vld [vmem:[%s6] sm:$0x1]
        %v825 = vperm.slane %v823, 0
        %v831 = vunpack.c.l.b16 %v815
        %v832 = vunpack.c.l.b16 %v816
        %v833 = vunpack.c.l.b16 %v817
        %v834 = vunpack.c.l.b16 %v818
        %v835 = vpack.c.b16 %v832, %v831
        %v836 = vpack.c.b16 %v834, %v833
        %v841 = vunpack.c.l.b16 %v819
        %v842 = vunpack.c.l.b16 %v820
        %v843 = vunpack.c.l.b16 %v821
        %v844 = vunpack.c.l.b16 %v822
        %v845 = vpack.c.b16 %v842, %v841
        %v846 = vpack.c.b16 %v844, %v843
        %v850 = vsel %vm506, %v835, 0
        %v853 = vsel %vm506, %v836, 0
        %855 = vmatpush.bf16.msra.mxu0 0
        %856 = vmatpush.bf16.msra.mxu0 0
        %857 = vmatpush.bf16.msra.mxu0 0
        %858 = vmatpush.bf16.msra.mxu0 0
        %859 = vmatpush.bf16.msra.mxu0 0
        %860 = vmatpush.bf16.msra.mxu0 0
        %861 = vmatpush.bf16.msra.mxu0 %v846
        %862 = vmatpush.bf16.msra.mxu0 %v845
        %863 = vmatmul.bf16.gmra.mxu0 %v850
        %v864 = vpop.f32.mrf.mxu0
        %v865 = vadd.f32 %v825, %v864
        %v866 = vpop.f32.mrf.mxu0
        %v867 = vadd.f32 %v825, %v866
        %868 = vmatmul.bf16.gmra.mxu0 %v853
        %v869 = vpop.f32.mrf.mxu0
        %v870 = vadd.f32 %v825, %v869
        %v871 = vpop.f32.mrf.mxu0
        %v872 = vadd.f32 %v825, %v871
        %873 = vdwg.mxu0
        %874 = vst [vmem:[#allocation4] sm:$0xff] %v865
        %875 = vst [vmem:[#allocation4 + $0x8] sm:$0xff] %v867
        %876 = vst [vmem:[#allocation4 + $0x10] sm:$0xff] %v870
        %877 = vst [vmem:[#allocation4 + $0x18] sm:$0xff] %v872
        %v878 = vld [vmem:[#allocation14] sm:$0xf]
        %v879 = vld [vmem:[#allocation14 + $0x4] sm:$0xf]
        %v880 = vld [vmem:[#allocation14 + $0x8] sm:$0xf]
        %v881 = vld [vmem:[#allocation14 + $0xc] sm:$0xf]
        %s882 = scalar_lea.vmem [#allocation2], 8
        %v883 = vld [vmem:[%s882] sm:$0xff]
        %s884 = scalar_lea.vmem [#allocation3], 8
        %v885 = vld [vmem:[%s884] sm:$0xff]
        %v886 = vld [vmem:[#allocation4] sm:$0xff]
        %v887 = vpack.c.bf16 %v883, %v883
        %v892 = vunpack.c.l.b16 %v878
        %v893 = vunpack.c.l.b16 %v879
        %v894 = vunpack.c.l.b16 %v880
        %v895 = vunpack.c.l.b16 %v881
        %v896 = vpack.c.b16 %v893, %v892
        %v897 = vpack.c.b16 %v895, %v894
        %v901 = vsel %vm506, %v887, 0
        %903 = vmatpush.bf16.msra.mxu0 0
        %904 = vmatpush.bf16.msra.mxu0 0
        %905 = vmatpush.bf16.msra.mxu0 0
        %906 = vmatpush.bf16.msra.mxu0 0
        %907 = vmatpush.bf16.msra.mxu0 0
        %908 = vmatpush.bf16.msra.mxu0 0
        %909 = vmatpush.bf16.msra.mxu0 %v897
        %910 = vmatpush.bf16.msra.mxu0 %v896
        %911 = vmatmul.bf16.gmra.mxu0 %v901
        %v912 = vpop.f32.mrf.mxu0
        %v913 = vadd.f32 0.0, %v912
        %v914 = vpop.f32.mrf.mxu0
        %915 = vdwg.mxu0
        %v916 = vadd.f32 %v886, %v913
        %v917 = vxor.u32 %v916, 2147483648
        %v918 = vmul.f32 %v917, 1.442695
        %v919 = vpow.pop %v918
        %v920 = vadd.f32 %v919, 1.0
        %v921 = vrcp.pop %v920
        %v922 = vmul.f32 %v920, %v921
        %v923 = vsub.f32 1.0, %v922
        %v924 = vmul.f32 %v921, %v923
        %v925 = vadd.f32 %v921, %v924
        %vm926 = vweird.f32 %v920
        %vm927 = vweird.f32 %v921
        %vm928 = vmor %vm926, %vm927
        %v929 = vsel %vm928, %v921, %v925
        %v930 = vand.u32 2147483647, %v920
        %vm931 = vcmp.eq.f32.partialorder %v930, 8.507059e+37
        %v932 = vand.u32 %v920, 2147483648
        %v933 = vor.u32 1.1754944e-38, %v932
        %v934 = vsel %vm931, %v933, %v929
        %v935 = vmul.f32 1.0, %v934
        %v936 = vtanh.pop %v916
        %938 = vrot.lane.b32.xlu0 %v885, 32
        %v939 = vpop.permute.xlu0 %938
        %v941 = vmul.f32 %v935, %v939
        %943 = vrot.lane.b32.xlu0 %v936, 64
        %v944 = vpop.permute.xlu0 %943
        %v946 = vmul.f32 %v935, %v944
        %948 = vrot.lane.b32.xlu0 %v946, 32
        %v949 = vpop.permute.xlu0 %948
        %v951 = vadd.f32 %v941, %v949
        %v952 = vtanh.pop %v951
        %954 = vrot.lane.b32.xlu0 %v952, 64
        %v955 = vpop.permute.xlu0 %954
        %v957 = vmul.f32 %v935, %v955
        %959 = vrot.lane.b32.xlu0 %v883, 96
        %v960 = vpop.permute.xlu0 %959
        %v962 = vsel %vm569, %v957, %v960
        %v963 = vsel %vm569, %v951, %v939
        %v964 = vld [vmem:[%s583] sm:$0xff]
        %v965 = vpack.c.bf16 %v962, %v962
        %967 = vrot.lane.b32.xlu0 %v965, 32
        %v968 = vpop.permute.xlu0 %967
        %v970 = vsel %vm506, %v968, 0
        %972 = vmatpush.bf16.msra.mxu0 0
        %973 = vmatpush.bf16.msra.mxu0 0
        %974 = vmatpush.bf16.msra.mxu0 0
        %975 = vmatpush.bf16.msra.mxu0 0
        %976 = vmatpush.bf16.msra.mxu0 0
        %977 = vmatpush.bf16.msra.mxu0 0
        %978 = vmatpush.bf16.msra.mxu0 %v897
        %979 = vmatpush.bf16.msra.mxu0 %v896
        %980 = vmatmul.bf16.gmra.mxu0 %v970
        %v981 = vpop.f32.mrf.mxu0
        %v982 = vadd.f32 0.0, %v981
        %v983 = vpop.f32.mrf.mxu0
        %984 = vdwg.mxu0
        %v985 = vadd.f32 %v964, %v982
        %v986 = vxor.u32 %v985, 2147483648
        %v987 = vmul.f32 %v986, 1.442695
        %v988 = vpow.pop %v987
        %v989 = vadd.f32 %v988, 1.0
        %v990 = vrcp.pop %v989
        %v991 = vmul.f32 %v989, %v990
        %v992 = vsub.f32 1.0, %v991
        %v993 = vmul.f32 %v990, %v992
        %v994 = vadd.f32 %v990, %v993
        %vm995 = vweird.f32 %v989
        %vm996 = vweird.f32 %v990
        %vm997 = vmor %vm995, %vm996
        %v998 = vsel %vm997, %v990, %v994
        %v999 = vand.u32 2147483647, %v989
        %vm1000 = vcmp.eq.f32.partialorder %v999, 8.507059e+37
        %v1001 = vand.u32 %v989, 2147483648
        %v1002 = vor.u32 1.1754944e-38, %v1001
        %v1003 = vsel %vm1000, %v1002, %v998
        %v1004 = vmul.f32 1.0, %v1003
        %v1005 = vtanh.pop %v985
        %v1006 = vmul.f32 %v1004, %v963
        %1008 = vrot.lane.b32.xlu0 %v1005, 64
        %v1009 = vpop.permute.xlu0 %1008
        %v1011 = vmul.f32 %v1004, %v1009
        %1013 = vrot.lane.b32.xlu0 %v1011, 32
        %v1014 = vpop.permute.xlu0 %1013
        %v1016 = vadd.f32 %v1006, %v1014
        %v1017 = vtanh.pop %v1016
        %1019 = vrot.lane.b32.xlu0 %v1017, 64
        %v1020 = vpop.permute.xlu0 %1019
        %v1022 = vmul.f32 %v1004, %v1020
        %v1023 = vsel %vm647, %v1022, %v962
        %v1024 = vsel %vm647, %v1016, %v963
        %v1025 = vld [vmem:[%s657] sm:$0xff]
        %v1026 = vpack.c.bf16 %v1023, %v1023
        %1028 = vrot.lane.b32.xlu0 %v1026, 32
        %v1029 = vpop.permute.xlu0 %1028
        %v1031 = vsel %vm506, %v1029, 0
        %1033 = vmatpush.bf16.msra.mxu0 0
        %1034 = vmatpush.bf16.msra.mxu0 0
        %1035 = vmatpush.bf16.msra.mxu0 0
        %1036 = vmatpush.bf16.msra.mxu0 0
        %1037 = vmatpush.bf16.msra.mxu0 0
        %1038 = vmatpush.bf16.msra.mxu0 0
        %1039 = vmatpush.bf16.msra.mxu0 %v897
        %1040 = vmatpush.bf16.msra.mxu0 %v896
        %1041 = vmatmul.bf16.gmra.mxu0 %v1031
        %v1042 = vpop.f32.mrf.mxu0
        %v1043 = vadd.f32 0.0, %v1042
        %v1044 = vpop.f32.mrf.mxu0
        %1045 = vdwg.mxu0
        %v1046 = vadd.f32 %v1025, %v1043
        %v1047 = vxor.u32 %v1046, 2147483648
        %v1048 = vmul.f32 %v1047, 1.442695
        %v1049 = vpow.pop %v1048
        %v1050 = vadd.f32 %v1049, 1.0
        %v1051 = vrcp.pop %v1050
        %v1052 = vmul.f32 %v1050, %v1051
        %v1053 = vsub.f32 1.0, %v1052
        %v1054 = vmul.f32 %v1051, %v1053
        %v1055 = vadd.f32 %v1051, %v1054
        %vm1056 = vweird.f32 %v1050
        %vm1057 = vweird.f32 %v1051
        %vm1058 = vmor %vm1056, %vm1057
        %v1059 = vsel %vm1058, %v1051, %v1055
        %v1060 = vand.u32 2147483647, %v1050
        %vm1061 = vcmp.eq.f32.partialorder %v1060, 8.507059e+37
        %v1062 = vand.u32 %v1050, 2147483648
        %v1063 = vor.u32 1.1754944e-38, %v1062
        %v1064 = vsel %vm1061, %v1063, %v1059
        %v1065 = vmul.f32 1.0, %v1064
        %v1066 = vtanh.pop %v1046
        %v1067 = vmul.f32 %v1065, %v1024
        %1069 = vrot.lane.b32.xlu0 %v1066, 64
        %v1070 = vpop.permute.xlu0 %1069
        %v1072 = vmul.f32 %v1065, %v1070
        %1074 = vrot.lane.b32.xlu0 %v1072, 32
        %v1075 = vpop.permute.xlu0 %1074
        %v1077 = vadd.f32 %v1067, %v1075
        %v1078 = vtanh.pop %v1077
        %1080 = vrot.lane.b32.xlu0 %v1078, 64
        %v1081 = vpop.permute.xlu0 %1080
        %v1083 = vmul.f32 %v1065, %v1081
        %v1084 = vsel %vm721, %v1083, %v1023
        %v1085 = vsel %vm721, %v1077, %v1024
        %v1086 = vld [vmem:[%s731] sm:$0xff]
        %v1087 = vpack.c.bf16 %v1084, %v1084
        %1089 = vrot.lane.b32.xlu0 %v1087, 32
        %v1090 = vpop.permute.xlu0 %1089
        %v1092 = vsel %vm506, %v1090, 0
        %1094 = vmatpush.bf16.msra.mxu0 0
        %1095 = vmatpush.bf16.msra.mxu0 0
        %1096 = vmatpush.bf16.msra.mxu0 0
        %1097 = vmatpush.bf16.msra.mxu0 0
        %1098 = vmatpush.bf16.msra.mxu0 0
        %1099 = vmatpush.bf16.msra.mxu0 0
        %1100 = vmatpush.bf16.msra.mxu0 %v897
        %1101 = vmatpush.bf16.msra.mxu0 %v896
        %1102 = vmatmul.bf16.gmra.mxu0 %v1092
        %v1103 = vpop.f32.mrf.mxu0
        %v1104 = vadd.f32 0.0, %v1103
        %v1105 = vpop.f32.mrf.mxu0
        %1106 = vdwg.mxu0
        %v1107 = vadd.f32 %v1086, %v1104
        %v1108 = vxor.u32 %v1107, 2147483648
        %v1109 = vmul.f32 %v1108, 1.442695
        %v1110 = vpow.pop %v1109
        %v1111 = vadd.f32 %v1110, 1.0
        %v1112 = vrcp.pop %v1111
        %v1113 = vmul.f32 %v1111, %v1112
        %v1114 = vsub.f32 1.0, %v1113
        %v1115 = vmul.f32 %v1112, %v1114
        %v1116 = vadd.f32 %v1112, %v1115
        %vm1117 = vweird.f32 %v1111
        %vm1118 = vweird.f32 %v1112
        %vm1119 = vmor %vm1117, %vm1118
        %v1120 = vsel %vm1119, %v1112, %v1116
        %v1121 = vand.u32 2147483647, %v1111
        %vm1122 = vcmp.eq.f32.partialorder %v1121, 8.507059e+37
        %v1123 = vand.u32 %v1111, 2147483648
        %v1124 = vor.u32 1.1754944e-38, %v1123
        %v1125 = vsel %vm1122, %v1124, %v1120
        %v1126 = vmul.f32 1.0, %v1125
        %v1127 = vtanh.pop %v1107
        %v1128 = vmul.f32 %v1126, %v1085
        %1130 = vrot.lane.b32.xlu0 %v1127, 64
        %v1131 = vpop.permute.xlu0 %1130
        %v1133 = vmul.f32 %v1126, %v1131
        %1135 = vrot.lane.b32.xlu0 %v1133, 32
        %v1136 = vpop.permute.xlu0 %1135
        %v1138 = vadd.f32 %v1128, %v1136
        %v1139 = vtanh.pop %v1138
        %1141 = vrot.lane.b32.xlu0 %v1139, 64
        %v1142 = vpop.permute.xlu0 %1141
        %v1144 = vmul.f32 %v1126, %v1142
        %v1145 = vsel %vm795, %v1144, %v1084
        %v1146 = vsel %vm795, %v1138, %v1085
        %1148 = vrot.lane.b32.xlu0 %v1145, 32
        %v1149 = vpop.permute.xlu0 %1148
        %1151 = vst.msk [vmem:[%s882] sm:$0xff] %vm506, %v1149
        %1153 = vrot.lane.b32.xlu0 %v1146, 96
        %v1154 = vpop.permute.xlu0 %1153
        %1156 = vst.msk [vmem:[%s884] sm:$0xff] %vm506, %v1154
        %v1157 = vld [vmem:[#allocation2] sm:$0xff]
        %v1158 = vld [vmem:[#allocation2 + $0x8] sm:$0xff]
        %1159 = vst.msk [vmem:[%s411] sm:$0xff] %vm506, %v1157
        %1160 = vst.msk [vmem:[%s411 + $0x8] sm:$0xff] %vm506, %v1158
        %v1161 = vld [vmem:[#allocation3] sm:$0xff]
        %v1162 = vld [vmem:[#allocation3 + $0x8] sm:$0xff]
        %1163 = vst.msk [vmem:[%s418] sm:$0xff] %vm506, %v1161
        %1164 = vst.msk [vmem:[%s418 + $0x8] sm:$0xff] %vm506, %v1162
        %s1165 = sand.u32 %s205, 1
        %s1166 = scalar_lea.sflag [#allocation8], %s1165
        %s1167 = sand.u32 %s205, 1
        %s1168 = smul.addr %s1167, 16
        %s1169 = scalar_lea.vmem [#allocation15], %s1168
        %s1170 = sand.u32 %s231, 1
        %s1171 = scalar_lea.sflag [#allocation17], %s1170
        %s1172 = sand.u32 %s231, 1
        %s1173 = smul.addr %s1172, 16
        %s1174 = scalar_lea.vmem [#allocation16], %s1173
        // Predicated region
        $region73: #{tpu_custom_call.1} parent=47 // pred_check
          %p1175 = pneg %p215
        $region74: #{tpu_custom_call.1} parent=47 // pred_check_branch
          %1177 = sbr.rel (%p1175) target = $region76
        $region75: #{tpu_custom_call.1} parent=47 // pred_region
          %1179 = vsyncadd %s1166, 0
          %s1180 = smul.addr %s35, 8
          %s1181 = scalar_lea.hbm %s7, %s1180
          %s1182 = sshll.u32 %s1169, 4
          %s1183 = int_to_ptr.vmem [resolvable:$true] %s1182
          %s1184 = sshll.u32 %s1181, 4
          %s1185 = int_to_ptr.hbm [resolvable:$true] %s1184
          %1190 = dma.vmem_to_hbm [thread:$0]  %s1183, 256, %s1185, %s1166, 128, 256, 8
        $region76: #{tpu_custom_call.1} parent=47 // pred_fallthru
          _
        // Predicated region
        $region77: #{tpu_custom_call.1} parent=47 // pred_check
          %p1191 = pneg %p241
        $region78: #{tpu_custom_call.1} parent=47 // pred_check_branch
          %1193 = sbr.rel (%p1191) target = $region80
        $region79: #{tpu_custom_call.1} parent=47 // pred_region
          %1195 = vsyncadd %s1171, 0
          %s1196 = smul.addr %s35, 8
          %s1197 = scalar_lea.hbm %s8, %s1196
          %s1198 = sshll.u32 %s1174, 4
          %s1199 = int_to_ptr.vmem [resolvable:$true] %s1198
          %s1200 = sshll.u32 %s1197, 4
          %s1201 = int_to_ptr.hbm [resolvable:$true] %s1200
          %1206 = dma.vmem_to_hbm [thread:$0]  %s1199, 256, %s1201, %s1171, 128, 256, 8
        $region80: #{tpu_custom_call.1} parent=47 // pred_fallthru
          _
      $region48: #{tpu_custom_call.1} parent=5 // pred_fallthru
        _
      %p1207 = scmp.le.s32.totalorder 2, %s26
      // Predicated region
      $region81: #{tpu_custom_call.1} parent=5 // pred_check
        %p1208 = pneg %p1207
      $region82: #{tpu_custom_call.1} parent=5 // pred_check_branch
        %1210 = sbr.rel (%p1208) target = $region84
      $region83: #{tpu_custom_call.1} parent=5 // pred_region
        %s1211 = ssub.s32 %s26, 2
        // Predicated region
        $region85: #{tpu_custom_call.1} parent=83 // pred_check
          %p1212 = pneg %p221
        $region86: #{tpu_custom_call.1} parent=83 // pred_check_branch
          %1214 = sbr.rel (%p1212) target = $region88
        $region87: #{tpu_custom_call.1} parent=83 // pred_region
          %s1215 = sand.u32 %s206, 1
          %s1216 = scalar_lea.sflag [#allocation8], %s1215
          %s1217 = sand.u32 %s206, 1
          %s1218 = smul.addr %s1217, 16
          %s1219 = scalar_lea.vmem [#allocation15], %s1218
          %1221 = dma.done %s1216, 256
        $region88: #{tpu_custom_call.1} parent=83 // pred_fallthru
          _
        // Predicated region
        $region89: #{tpu_custom_call.1} parent=83 // pred_check
          %p1222 = pneg %p247
        $region90: #{tpu_custom_call.1} parent=83 // pred_check_branch
          %1224 = sbr.rel (%p1222) target = $region92
        $region91: #{tpu_custom_call.1} parent=83 // pred_region
          %s1225 = sand.u32 %s232, 1
          %s1226 = scalar_lea.sflag [#allocation17], %s1225
          %s1227 = sand.u32 %s232, 1
          %s1228 = smul.addr %s1227, 16
          %s1229 = scalar_lea.vmem [#allocation16], %s1228
          %1231 = dma.done %s1226, 256
        $region92: #{tpu_custom_call.1} parent=83 // pred_fallthru
          _
      $region84: #{tpu_custom_call.1} parent=5 // pred_fallthru
        _
    $region6: #{tpu_custom_call.1} parent=1 // loop_footer
      %s30 = sadd.s32 1, %s26
    $region7: #{tpu_custom_call.1} parent=1 // loop_footer_branch
      %25 = sbr.rel target = $region3
    $region8: #{tpu_custom_call.1} parent=1 // loop_exit
      _
    %1232 = vsyncpa [#allocation7], 1
    %s1233 = scalar_lea.sflag [#allocation7], 1
    %1234 = vsyncpa %s1233, 1
    %1235 = vsyncpa [#allocation10], 1
    %1236 = vsyncpa [#allocation13], 1
    %1237 = vsyncpa [#allocation8], 1
    %s1238 = scalar_lea.sflag [#allocation8], 1
    %1239 = vsyncpa %s1238, 1
    %1240 = vsyncpa [#allocation17], 1
    %s1241 = scalar_lea.sflag [#allocation17], 1
    %1242 = vsyncpa %s1241, 1

</llo_original>
